<compile_context>
chip_gen: v7x
topology: tpu7x:2x2x1
jax: 0.10.0
libtpu: 0.0.40
codegen_flags: <defaults>
</compile_context>

<pallas_src>
import functools

import jax
import jax.numpy as jnp
import numpy as np
from jax import lax
from jax.experimental import pallas as pl
from jax.experimental.pallas import tpu as pltpu

LANES = 128

# structure-slab slice indices
_A1, _A2, _SAME, _EYE, _TRIL, _NODEAUX, _GRAPHAUX = range(7)

_PARAM_NAMES = ("conv1_w", "conv1_b", "pool1_w", "pool1_b",
                "conv2_w", "conv2_b", "pool2_w", "pool2_b",
                "lin1_w", "lin1_b", "lin3_w", "lin3_b")


# ----------------------------- kernel body ---------------------------------

def _branch(a, feat, w_c, b_c, w_p, b_p, onehot, onehot_t, eye, same, tril, kthr):
    """relu(GCNConv) -> SAGPool (top-k by GCN score) -> (gmp, gap), each (G,H)."""
    num_graphs = onehot.shape[1]

    # GCNConv: A_hat @ (X @ W) + b, then ReLU                     -> (N, H)
    h = jnp.dot(a, jnp.dot(feat, w_c, preferred_element_type=jnp.float32),
                preferred_element_type=jnp.float32) + b_c
    h = jnp.maximum(h, 0.0)

    # SAGPool score = GCNConv(H -> 1), no activation              -> (N, 1)
    score = jnp.dot(a, jnp.dot(h, w_p, preferred_element_type=jnp.float32),
                    preferred_element_type=jnp.float32) + b_p

    # Bit-exact transpose of score to lane orientation (multiply by identity +
    # sublane reduce).  Do NOT replace with a recompute / real transpose: the
    # float-equality tie logic below relies on bit-exactness.
    score_row = jnp.sum(score * eye, axis=0, keepdims=True)              # (1,N)

    # topk(score, ratio, batch): keep node i iff within-graph rank < k_graph.
    # Ties broken by node index (precomputed strict-lower mask `tril`).
    # TODO(synk): torch.topk tie order is unspecified; index tie-break may differ.
    outranked = jnp.where(
        (score_row > score) | ((score_row == score) & (tril > 0.5)), 1.0, 0.0)
    rank = jnp.sum(same * outranked, axis=1, keepdims=True)               # (N,1)
    keep = jnp.where(rank < kthr, 1.0, 0.0)                               # (N,1)

    # SAGPool gating: x[perm] * tanh(score[perm])  (gate-then-select == select-then-gate)
    xg = h * jnp.tanh(score)                                              # (N,H)
    kept = keep * xg                                                      # (N,H)

    # gap: per-graph mean over kept nodes via one MXU matmul.
    seg_sum = jnp.dot(onehot_t, kept, preferred_element_type=jnp.float32)  # (G,H)
    cnt = jnp.maximum(
        jnp.dot(onehot_t, keep, preferred_element_type=jnp.float32), 1.0)  # (G,1)
    gmean = seg_sum / cnt

    # gmp: per-graph max over kept nodes. Tiny static loop over G (fine at G=2;
    # switch to a segmented max / grid axis if G grows past ~8).
    mask_col = onehot * keep                                              # (N,G)
    gsel = lax.broadcasted_iota(jnp.int32, (num_graphs, 1), 0)            # (G,1)
    gmax = jnp.zeros_like(gmean)
    for gi in range(num_graphs):
        m = mask_col[:, gi:gi + 1]                                        # (N,1)
        row = jnp.max(jnp.where(m > 0.5, xg, -1e30), axis=0, keepdims=True)
        gmax = gmax + jnp.where(gsel == gi, 1.0, 0.0) * row
    return gmax, gmean


def _net_kernel(struct_ref, params_ref, x_ref, s_ref, o_ref, cat_ref,
                *, dims, poff):
    N, F, H, G, C = dims["N"], dims["F"], dims["H"], dims["G"], dims["C"]

    # --- unpack static structure slab (resident in VMEM, fetched once) ------
    a1 = struct_ref[_A1]
    a2 = struct_ref[_A2]
    same = struct_ref[_SAME]
    eye = struct_ref[_EYE]
    tril = struct_ref[_TRIL]
    nodeaux = struct_ref[_NODEAUX]
    onehot = nodeaux[:, 0:G]                                              # (N,G)
    kthr = nodeaux[:, G:G + 1]                                            # (N,1)
    onehot_t = struct_ref[_GRAPHAUX][0:G, :]                              # (G,N)

    # --- unpack parameter slab (static 8-aligned row offsets) ---------------
    P = params_ref

    def seg(name, rows, cols):
        o = poff[name]
        return P[o:o + rows, 0:cols]

    c1w = seg("conv1_w", F, H); c1b = seg("conv1_b", 1, H)
    p1w = seg("pool1_w", H, 1); p1b = seg("pool1_b", 1, 1)
    c2w = seg("conv2_w", N, H); c2b = seg("conv2_b", 1, H)
    p2w = seg("pool2_w", H, 1); p2b = seg("pool2_b", 1, 1)
    l1w = seg("lin1_w", 4 * H, H); l1b = seg("lin1_b", 1, H)
    l3w = seg("lin3_w", H, LANES); l3b = seg("lin3_b", 1, LANES)   # zero-padded lanes

    x = x_ref[0]                                                          # (N,F)
    s = s_ref[0]                                                          # (N,N)

    # Branch 1: conv1(x, edge1) -> pool1 -> [gmp | gap]
    gmax1, gmean1 = _branch(a1, x, c1w, c1b, p1w, p1b,
                            onehot, onehot_t, eye, same, tril, kthr)
    # Branch 2: conv2(s, edge2) -> pool2 -> [gmp | gap]
    gmax2, gmean2 = _branch(a2, s, c2w, c2b, p2w, p2b,
                            onehot, onehot_t, eye, same, tril, kthr)

    # lin1 over cat([gmp1, gap1, gmp2, gap2]): assemble the (G, 4H) concat in a
    # VMEM scratch with static lane-slice stores, then ONE MXU matmul (4H=128
    # fills the lane/contraction dim exactly).
    cat_ref[:, 0 * H:1 * H] = gmax1
    cat_ref[:, 1 * H:2 * H] = gmean1
    cat_ref[:, 2 * H:3 * H] = gmax2
    cat_ref[:, 3 * H:4 * H] = gmean2
    z = jnp.dot(cat_ref[...], l1w, preferred_element_type=jnp.float32) + l1b
    z = jnp.maximum(z, 0.0)
    # F.dropout(..., training=False) is identity in eval mode.
    # TODO(synk): training-mode dropout (scaled Bernoulli mask) not implemented.

    # lin3 + log_softmax, computed on a 128-lane padded tile (lanes >= C are
    # masked to -1e30 so they contribute exp(.)=0); wrapper slices to C.
    logits = jnp.dot(z, l3w, preferred_element_type=jnp.float32) + l3b    # (G,128)
    lane = lax.broadcasted_iota(jnp.int32, (G, LANES), 1)
    logits = jnp.where(lane < C, logits, -1e30)
    m = jnp.max(logits, axis=-1, keepdims=True)
    lse = m + jnp.log(jnp.sum(jnp.exp(logits - m), axis=-1, keepdims=True))
    o_ref[0] = logits - lse


# ------------------- host-side static preprocessing -------------------------

def build_normalized_adj(edge_index, n):
    """Dense D^-1/2 (A + I) D^-1/2 (GCNConv propagation). Static per structure."""
    src, dst = np.asarray(edge_index[0]), np.asarray(edge_index[1])
    a = np.zeros((n, n), np.float32)
    a[src, dst] = 1.0
    a = a + np.eye(n, dtype=np.float32)
    dinv = 1.0 / np.sqrt(a.sum(axis=1))
    return (a * dinv[:, None] * dinv[None, :]).astype(np.float32)


def _pack_struct(a1, a2, batch, num_graphs, pooling_ratio):
    n = a1.shape[0]
    g = num_graphs
    assert g + 1 <= n, "structure-slab packing assumes num_graphs + 1 <= num_nodes"
    b = np.asarray(batch)
    onehot = (b[:, None] == np.arange(g)[None, :]).astype(np.float32)     # (N,G)
    counts = onehot.sum(axis=0).astype(np.int64)
    # exact per-graph k = ceil(ratio * n_g), computed host-side.
    k_graph = np.array([int(np.ceil(pooling_ratio * int(c))) for c in counts],
                       np.float32)
    kthr = k_graph[b]                                                     # (N,)

    slab = np.zeros((7, n, n), np.float32)
    slab[_A1] = a1
    slab[_A2] = a2
    slab[_SAME] = onehot @ onehot.T
    slab[_EYE] = np.eye(n, dtype=np.float32)
    slab[_TRIL] = np.tril(np.ones((n, n), np.float32), k=-1)   # 1 where j < i
    slab[_NODEAUX, :, 0:g] = onehot
    slab[_NODEAUX, :, g] = kthr
    slab[_GRAPHAUX, 0:g, :] = onehot.T
    return jnp.asarray(slab)


def _pack_params(params):
    """Stack all weights/biases into one (rows, 128) f32 slab, each segment
    zero-padded to 128 lanes and to an 8-aligned row offset."""
    blocks, offsets, cur = [], {}, 0
    for name in _PARAM_NAMES:
        a = np.asarray(params[name], np.float32)
        r, c = a.shape
        assert c <= LANES
        r_pad = -(-r // 8) * 8
        blk = np.zeros((r_pad, LANES), np.float32)
        blk[:r, :c] = a
        offsets[name] = cur
        blocks.append(blk)
        cur += r_pad
    return jnp.asarray(np.concatenate(blocks, axis=0)), offsets


# ------------------------------ wrapper -------------------------------------

def make_forward(params, a1, a2, batch, num_graphs, pooling_ratio):
    """Build a jitted forward(x_batch, s_batch) -> (B, G, C) log-probs."""
    a1 = np.asarray(a1, np.float32)
    a2 = np.asarray(a2, np.float32)
    n = a1.shape[0]
    f = int(np.asarray(params["conv1_w"]).shape[0])
    h = int(np.asarray(params["conv1_w"]).shape[1])
    c = int(np.asarray(params["lin3_w"]).shape[1])
    g = int(num_graphs)
    dims = dict(N=n, F=f, H=h, G=g, C=c)

    struct = _pack_struct(a1, a2, batch, g, pooling_ratio)
    pslab, poff = _pack_params(params)
    kernel = functools.partial(_net_kernel, dims=dims, poff=poff)

    def forward(x_batch, s_batch):
        bsz = x_batch.shape[0]
        out = pl.pallas_call(
            kernel,
            out_shape=jax.ShapeDtypeStruct((bsz, g, LANES), jnp.float32),
            grid=(bsz,),
            in_specs=[
                pl.BlockSpec((7, n, n), lambda i: (0, 0, 0)),       # struct, resident
                pl.BlockSpec(pslab.shape, lambda i: (0, 0)),        # params, resident
                pl.BlockSpec((1, n, f), lambda i: (i, 0, 0)),       # x per instance
                pl.BlockSpec((1, n, n), lambda i: (i, 0, 0)),       # s per instance
            ],
            out_specs=pl.BlockSpec((1, g, LANES), lambda i: (i, 0, 0)),
            scratch_shapes=[pltpu.VMEM((g, 4 * h), jnp.float32)],
            compiler_params=pltpu.CompilerParams(
                dimension_semantics=("parallel",),
                vmem_limit_bytes=16 * 1024 * 1024),
        )(struct, pslab, x_batch, s_batch)
        return out[:, :, :c]

    return jax.jit(forward)


# ------------------------------ example run ---------------------------------

if __name__ == "__main__":
    NUM_FEATURES = 4
    NHID = 32
    NUM_NODES = 16        # total nodes; also feature dim of data.s (conv2 in_channels)
    NUM_CLASSES = 3
    POOLING_RATIO = 0.5
    G = 2                 # graphs per instance
    B = 8                 # instances (graph-batches) per pallas_call
    NODES_PER_GRAPH = NUM_NODES // G

    key = jax.random.PRNGKey(0)
    k = jax.random.split(key, 14)

    params = {
        "conv1_w": 0.1 * jax.random.normal(k[0], (NUM_FEATURES, NHID), jnp.float32),
        "conv1_b": 0.1 * jax.random.normal(k[1], (1, NHID), jnp.float32),
        "pool1_w": 0.1 * jax.random.normal(k[2], (NHID, 1), jnp.float32),
        "pool1_b": 0.1 * jax.random.normal(k[3], (1, 1), jnp.float32),
        "conv2_w": 0.1 * jax.random.normal(k[4], (NUM_NODES, NHID), jnp.float32),
        "conv2_b": 0.1 * jax.random.normal(k[5], (1, NHID), jnp.float32),
        "pool2_w": 0.1 * jax.random.normal(k[6], (NHID, 1), jnp.float32),
        "pool2_b": 0.1 * jax.random.normal(k[7], (1, 1), jnp.float32),
        "lin1_w": 0.1 * jax.random.normal(k[8], (NHID * 4, NHID), jnp.float32),
        "lin1_b": 0.1 * jax.random.normal(k[9], (1, NHID), jnp.float32),
        "lin3_w": 0.1 * jax.random.normal(k[10], (NHID, NUM_CLASSES), jnp.float32),
        "lin3_b": 0.1 * jax.random.normal(k[11], (1, NUM_CLASSES), jnp.float32),
    }

    # Deterministic graph structure: per-graph ring (edge1) and skip-2 ring
    # (edge2), both directions, node indices offset per graph.
    src1, dst1, src2, dst2 = [], [], [], []
    for gi in range(G):
        off = gi * NODES_PER_GRAPH
        for i in range(NODES_PER_GRAPH):
            j1 = (i + 1) % NODES_PER_GRAPH
            j2 = (i + 2) % NODES_PER_GRAPH
            src1 += [off + i, off + j1]; dst1 += [off + j1, off + i]
            src2 += [off + i, off + j2]; dst2 += [off + j2, off + i]

    batch = np.repeat(np.arange(G, dtype=np.int32), NODES_PER_GRAPH)
    a1 = build_normalized_adj((src1, dst1), NUM_NODES)
    a2 = build_normalized_adj((src2, dst2), NUM_NODES)

    fwd = make_forward(params, a1, a2, batch, G, POOLING_RATIO)

    x_batch = jax.random.normal(k[12], (B, NUM_NODES, NUM_FEATURES), jnp.float32)
    s_batch = jax.random.normal(k[13], (B, NUM_NODES, NUM_NODES), jnp.float32)

    out = jax.block_until_ready(fwd(x_batch, s_batch))
    assert out.shape == (B, G, NUM_CLASSES)
    assert bool(jnp.all(jnp.isfinite(out)))
    assert bool(jnp.all(jnp.abs(jnp.sum(jnp.exp(out), axis=-1) - 1.0) < 1e-4))
    print("KERNEL_OK")
</pallas_src>

<mosaic_0001>
module attributes {stable_mosaic.version = 11 : i64} {
  func.func @_net_kernel(%arg0: i32, %arg1: memref<7x16x16xf32, #tpu.memory_space<vmem>>, %arg2: memref<296x128xf32, #tpu.memory_space<vmem>>, %arg3: memref<1x16x4xf32, #tpu.memory_space<vmem>>, %arg4: memref<1x16x16xf32, #tpu.memory_space<vmem>>, %arg5: memref<1x2x128xf32, #tpu.memory_space<vmem>>, %arg6: memref<2x128xf32, #tpu.memory_space<vmem>>) attributes {dimension_semantics = [#tpu.dimension_semantics<parallel>], iteration_bounds = array<i64: 8>, scalar_prefetch = 0 : i64, scratch_operands = 1 : i64, tpu.core_type = #tpu.core_type<tc>, window_params = [{pipeline_mode = #tpu.pipeline_mode<synchronous>, transform_indices = @transform_0, window_bounds = array<i64: 7, 16, 16>}, {pipeline_mode = #tpu.pipeline_mode<synchronous>, transform_indices = @transform_1, window_bounds = array<i64: 296, 128>}, {transform_indices = @transform_2, window_bounds = array<i64: 1, 16, 4>}, {transform_indices = @transform_3, window_bounds = array<i64: 1, 16, 16>}, {transform_indices = @transform_4, window_bounds = array<i64: 1, 2, 128>}]} {
    %c0 = arith.constant 0 : index
    %c0_0 = arith.constant 0 : index
    %c0_1 = arith.constant 0 : index
    %0 = vector.load %arg1[%c0, %c0_0, %c0_1] : memref<7x16x16xf32, #tpu.memory_space<vmem>>, vector<1x16x16xf32>
    %1 = vector.shape_cast %0 : vector<1x16x16xf32> to vector<16x16xf32>
    %c1 = arith.constant 1 : index
    %c0_2 = arith.constant 0 : index
    %c0_3 = arith.constant 0 : index
    %2 = vector.load %arg1[%c1, %c0_2, %c0_3] : memref<7x16x16xf32, #tpu.memory_space<vmem>>, vector<1x16x16xf32>
    %3 = vector.shape_cast %2 : vector<1x16x16xf32> to vector<16x16xf32>
    %c2 = arith.constant 2 : index
    %c0_4 = arith.constant 0 : index
    %c0_5 = arith.constant 0 : index
    %4 = vector.load %arg1[%c2, %c0_4, %c0_5] : memref<7x16x16xf32, #tpu.memory_space<vmem>>, vector<1x16x16xf32>
    %5 = vector.shape_cast %4 : vector<1x16x16xf32> to vector<16x16xf32>
    %c3 = arith.constant 3 : index
    %c0_6 = arith.constant 0 : index
    %c0_7 = arith.constant 0 : index
    %6 = vector.load %arg1[%c3, %c0_6, %c0_7] : memref<7x16x16xf32, #tpu.memory_space<vmem>>, vector<1x16x16xf32>
    %7 = vector.shape_cast %6 : vector<1x16x16xf32> to vector<16x16xf32>
    %c4 = arith.constant 4 : index
    %c0_8 = arith.constant 0 : index
    %c0_9 = arith.constant 0 : index
    %8 = vector.load %arg1[%c4, %c0_8, %c0_9] : memref<7x16x16xf32, #tpu.memory_space<vmem>>, vector<1x16x16xf32>
    %9 = vector.shape_cast %8 : vector<1x16x16xf32> to vector<16x16xf32>
    %c5 = arith.constant 5 : index
    %c0_10 = arith.constant 0 : index
    %c0_11 = arith.constant 0 : index
    %10 = vector.load %arg1[%c5, %c0_10, %c0_11] : memref<7x16x16xf32, #tpu.memory_space<vmem>>, vector<1x16x16xf32>
    %11 = vector.shape_cast %10 : vector<1x16x16xf32> to vector<16x16xf32>
    %12 = vector.extract_strided_slice %11 {offsets = [0, 0], sizes = [16, 2], strides = [1, 1]} : vector<16x16xf32> to vector<16x2xf32>
    %13 = vector.extract_strided_slice %11 {offsets = [0, 2], sizes = [16, 1], strides = [1, 1]} : vector<16x16xf32> to vector<16x1xf32>
    %c6 = arith.constant 6 : index
    %c0_12 = arith.constant 0 : index
    %c0_13 = arith.constant 0 : index
    %14 = vector.load %arg1[%c6, %c0_12, %c0_13] : memref<7x16x16xf32, #tpu.memory_space<vmem>>, vector<1x16x16xf32>
    %15 = vector.shape_cast %14 : vector<1x16x16xf32> to vector<16x16xf32>
    %16 = vector.extract_strided_slice %15 {offsets = [0, 0], sizes = [2, 16], strides = [1, 1]} : vector<16x16xf32> to vector<2x16xf32>
    %c0_14 = arith.constant 0 : index
    %c0_15 = arith.constant 0 : index
    %17 = vector.load %arg2[%c0_14, %c0_15] : memref<296x128xf32, #tpu.memory_space<vmem>>, vector<4x32xf32>
    %c8 = arith.constant 8 : index
    %c0_16 = arith.constant 0 : index
    %18 = vector.load %arg2[%c8, %c0_16] : memref<296x128xf32, #tpu.memory_space<vmem>>, vector<1x32xf32>
    %c16 = arith.constant 16 : index
    %c0_17 = arith.constant 0 : index
    %19 = vector.load %arg2[%c16, %c0_17] : memref<296x128xf32, #tpu.memory_space<vmem>>, vector<32x1xf32>
    %c48 = arith.constant 48 : index
    %c0_18 = arith.constant 0 : index
    %20 = vector.load %arg2[%c48, %c0_18] : memref<296x128xf32, #tpu.memory_space<vmem>>, vector<1x1xf32>
    %c56 = arith.constant 56 : index
    %c0_19 = arith.constant 0 : index
    %21 = vector.load %arg2[%c56, %c0_19] : memref<296x128xf32, #tpu.memory_space<vmem>>, vector<16x32xf32>
    %c72 = arith.constant 72 : index
    %c0_20 = arith.constant 0 : index
    %22 = vector.load %arg2[%c72, %c0_20] : memref<296x128xf32, #tpu.memory_space<vmem>>, vector<1x32xf32>
    %c80 = arith.constant 80 : index
    %c0_21 = arith.constant 0 : index
    %23 = vector.load %arg2[%c80, %c0_21] : memref<296x128xf32, #tpu.memory_space<vmem>>, vector<32x1xf32>
    %c112 = arith.constant 112 : index
    %c0_22 = arith.constant 0 : index
    %24 = vector.load %arg2[%c112, %c0_22] : memref<296x128xf32, #tpu.memory_space<vmem>>, vector<1x1xf32>
    %c120 = arith.constant 120 : index
    %c0_23 = arith.constant 0 : index
    %25 = vector.load %arg2[%c120, %c0_23] : memref<296x128xf32, #tpu.memory_space<vmem>>, vector<128x32xf32>
    %c248 = arith.constant 248 : index
    %c0_24 = arith.constant 0 : index
    %26 = vector.load %arg2[%c248, %c0_24] : memref<296x128xf32, #tpu.memory_space<vmem>>, vector<1x32xf32>
    %c256 = arith.constant 256 : index
    %c0_25 = arith.constant 0 : index
    %27 = vector.load %arg2[%c256, %c0_25] : memref<296x128xf32, #tpu.memory_space<vmem>>, vector<32x128xf32>
    %c288 = arith.constant 288 : index
    %c0_26 = arith.constant 0 : index
    %28 = vector.load %arg2[%c288, %c0_26] : memref<296x128xf32, #tpu.memory_space<vmem>>, vector<1x128xf32>
    %c0_27 = arith.constant 0 : index
    %c0_28 = arith.constant 0 : index
    %c0_29 = arith.constant 0 : index
    %29 = vector.load %arg3[%c0_27, %c0_28, %c0_29] : memref<1x16x4xf32, #tpu.memory_space<vmem>>, vector<1x16x4xf32>
    %30 = vector.shape_cast %29 : vector<1x16x4xf32> to vector<16x4xf32>
    %c0_30 = arith.constant 0 : index
    %c0_31 = arith.constant 0 : index
    %c0_32 = arith.constant 0 : index
    %31 = vector.load %arg4[%c0_30, %c0_31, %c0_32] : memref<1x16x16xf32, #tpu.memory_space<vmem>>, vector<1x16x16xf32>
    %32 = vector.shape_cast %31 : vector<1x16x16xf32> to vector<16x16xf32>
    %cst = arith.constant dense<0.000000e+00> : vector<16x32xf32>
    %33 = tpu.matmul %30, %17, %cst {dimension_numbers = #tpu.dot_dimension_numbers<[1], [0], [0], [1], [0, 0, 1, 1], [], []>} : vector<16x4xf32>, vector<4x32xf32>, vector<16x32xf32> -> vector<16x32xf32>
    %cst_33 = arith.constant dense<0.000000e+00> : vector<16x32xf32>
    %34 = tpu.matmul %1, %33, %cst_33 {dimension_numbers = #tpu.dot_dimension_numbers<[1], [0], [0], [1], [0, 0, 1, 1], [], []>} : vector<16x16xf32>, vector<16x32xf32>, vector<16x32xf32> -> vector<16x32xf32>
    %35 = vector.broadcast %18 : vector<1x32xf32> to vector<16x32xf32>
    %36 = arith.addf %34, %35 : vector<16x32xf32>
    %cst_34 = arith.constant 0.000000e+00 : f32
    %37 = vector.broadcast %cst_34 : f32 to vector<16x32xf32>
    %38 = arith.maximumf %36, %37 : vector<16x32xf32>
    %cst_35 = arith.constant dense<0.000000e+00> : vector<16x1xf32>
    %39 = tpu.matmul %38, %19, %cst_35 {dimension_numbers = #tpu.dot_dimension_numbers<[1], [0], [0], [1], [0, 0, 1, 1], [], []>} : vector<16x32xf32>, vector<32x1xf32>, vector<16x1xf32> -> vector<16x1xf32>
    %cst_36 = arith.constant dense<0.000000e+00> : vector<16x1xf32>
    %40 = tpu.matmul %1, %39, %cst_36 {dimension_numbers = #tpu.dot_dimension_numbers<[1], [0], [0], [1], [0, 0, 1, 1], [], []>} : vector<16x16xf32>, vector<16x1xf32>, vector<16x1xf32> -> vector<16x1xf32>
    %41 = vector.broadcast %20 : vector<1x1xf32> to vector<16x1xf32>
    %42 = arith.addf %40, %41 : vector<16x1xf32>
    %43 = vector.broadcast %42 : vector<16x1xf32> to vector<16x16xf32>
    %44 = arith.mulf %43, %7 : vector<16x16xf32>
    %cst_37 = arith.constant dense<0.000000e+00> : vector<16xf32>
    %45 = vector.multi_reduction <add>, %44, %cst_37 [0] : vector<16x16xf32> to vector<16xf32>
    %46 = vector.shape_cast %45 : vector<16xf32> to vector<1x16xf32>
    %47 = vector.broadcast %46 : vector<1x16xf32> to vector<16x16xf32>
    %48 = vector.broadcast %42 : vector<16x1xf32> to vector<16x16xf32>
    %49 = arith.cmpf ogt, %47, %48 : vector<16x16xf32>
    %50 = vector.broadcast %46 : vector<1x16xf32> to vector<16x16xf32>
    %51 = vector.broadcast %42 : vector<16x1xf32> to vector<16x16xf32>
    %52 = arith.cmpf oeq, %50, %51 : vector<16x16xf32>
    %cst_38 = arith.constant 5.000000e-01 : f32
    %53 = vector.broadcast %cst_38 : f32 to vector<16x16xf32>
    %54 = arith.cmpf ogt, %9, %53 : vector<16x16xf32>
    %55 = arith.andi %52, %54 : vector<16x16xi1>
    %56 = arith.ori %49, %55 : vector<16x16xi1>
    %cst_39 = arith.constant 1.000000e+00 : f32
    %cst_40 = arith.constant 0.000000e+00 : f32
    %57 = vector.broadcast %cst_39 : f32 to vector<16x16xf32>
    %58 = vector.broadcast %cst_40 : f32 to vector<16x16xf32>
    %59 = arith.select %56, %57, %58 : vector<16x16xi1>, vector<16x16xf32>
    %60 = arith.mulf %5, %59 : vector<16x16xf32>
    %cst_41 = arith.constant dense<0.000000e+00> : vector<16xf32>
    %61 = vector.multi_reduction <add>, %60, %cst_41 [1] : vector<16x16xf32> to vector<16xf32>
    %62 = vector.shape_cast %61 : vector<16xf32> to vector<16x1xf32>
    %63 = arith.cmpf olt, %62, %13 : vector<16x1xf32>
    %cst_42 = arith.constant 1.000000e+00 : f32
    %cst_43 = arith.constant 0.000000e+00 : f32
    %64 = vector.broadcast %cst_42 : f32 to vector<16x1xf32>
    %65 = vector.broadcast %cst_43 : f32 to vector<16x1xf32>
    %66 = arith.select %63, %64, %65 : vector<16x1xi1>, vector<16x1xf32>
    %67 = math.tanh %42 : vector<16x1xf32>
    %68 = vector.broadcast %67 : vector<16x1xf32> to vector<16x32xf32>
    %69 = arith.mulf %38, %68 : vector<16x32xf32>
    %70 = vector.broadcast %66 : vector<16x1xf32> to vector<16x32xf32>
    %71 = arith.mulf %70, %69 : vector<16x32xf32>
    %cst_44 = arith.constant dense<0.000000e+00> : vector<2x32xf32>
    %72 = tpu.matmul %16, %71, %cst_44 {dimension_numbers = #tpu.dot_dimension_numbers<[1], [0], [0], [1], [0, 0, 1, 1], [], []>} : vector<2x16xf32>, vector<16x32xf32>, vector<2x32xf32> -> vector<2x32xf32>
    %cst_45 = arith.constant dense<0.000000e+00> : vector<2x1xf32>
    %73 = tpu.matmul %16, %66, %cst_45 {dimension_numbers = #tpu.dot_dimension_numbers<[1], [0], [0], [1], [0, 0, 1, 1], [], []>} : vector<2x16xf32>, vector<16x1xf32>, vector<2x1xf32> -> vector<2x1xf32>
    %cst_46 = arith.constant 1.000000e+00 : f32
    %74 = vector.broadcast %cst_46 : f32 to vector<2x1xf32>
    %75 = arith.maximumf %73, %74 : vector<2x1xf32>
    %76 = vector.broadcast %75 : vector<2x1xf32> to vector<2x32xf32>
    %77 = arith.divf %72, %76 : vector<2x32xf32>
    %78 = vector.broadcast %66 : vector<16x1xf32> to vector<16x2xf32>
    %79 = arith.mulf %12, %78 : vector<16x2xf32>
    %80 = tpu.iota {dimensions = array<i32: 0>} : vector<2x1xi32>
    %cst_47 = arith.constant 0.000000e+00 : f32
    %81 = vector.broadcast %cst_47 : f32 to vector<2x32xf32>
    %82 = vector.extract_strided_slice %79 {offsets = [0, 0], sizes = [16, 1], strides = [1, 1]} : vector<16x2xf32> to vector<16x1xf32>
    %cst_48 = arith.constant 5.000000e-01 : f32
    %83 = vector.broadcast %cst_48 : f32 to vector<16x1xf32>
    %84 = arith.cmpf ogt, %82, %83 : vector<16x1xf32>
    %cst_49 = arith.constant -1.000000e+30 : f32
    %85 = vector.shape_cast %84 : vector<16x1xi1> to vector<16x1xi1>
    %86 = vector.broadcast %85 : vector<16x1xi1> to vector<16x32xi1>
    %87 = vector.broadcast %cst_49 : f32 to vector<16x32xf32>
    %88 = arith.select %86, %69, %87 : vector<16x32xi1>, vector<16x32xf32>
    %cst_50 = arith.constant dense<0xFF800000> : vector<32xf32>
    %89 = vector.multi_reduction <maximumf>, %88, %cst_50 [0] : vector<16x32xf32> to vector<32xf32>
    %90 = vector.shape_cast %89 : vector<32xf32> to vector<1x32xf32>
    %c0_i32 = arith.constant 0 : i32
    %91 = vector.broadcast %c0_i32 : i32 to vector<2x1xi32>
    %92 = arith.cmpi eq, %80, %91 : vector<2x1xi32>
    %cst_51 = arith.constant 1.000000e+00 : f32
    %cst_52 = arith.constant 0.000000e+00 : f32
    %93 = vector.broadcast %cst_51 : f32 to vector<2x1xf32>
    %94 = vector.broadcast %cst_52 : f32 to vector<2x1xf32>
    %95 = arith.select %92, %93, %94 : vector<2x1xi1>, vector<2x1xf32>
    %96 = vector.broadcast %95 : vector<2x1xf32> to vector<2x32xf32>
    %97 = vector.broadcast %90 : vector<1x32xf32> to vector<2x32xf32>
    %98 = arith.mulf %96, %97 : vector<2x32xf32>
    %99 = arith.addf %81, %98 : vector<2x32xf32>
    %100 = vector.extract_strided_slice %79 {offsets = [0, 1], sizes = [16, 1], strides = [1, 1]} : vector<16x2xf32> to vector<16x1xf32>
    %cst_53 = arith.constant 5.000000e-01 : f32
    %101 = vector.broadcast %cst_53 : f32 to vector<16x1xf32>
    %102 = arith.cmpf ogt, %100, %101 : vector<16x1xf32>
    %cst_54 = arith.constant -1.000000e+30 : f32
    %103 = vector.shape_cast %102 : vector<16x1xi1> to vector<16x1xi1>
    %104 = vector.broadcast %103 : vector<16x1xi1> to vector<16x32xi1>
    %105 = vector.broadcast %cst_54 : f32 to vector<16x32xf32>
    %106 = arith.select %104, %69, %105 : vector<16x32xi1>, vector<16x32xf32>
    %cst_55 = arith.constant dense<0xFF800000> : vector<32xf32>
    %107 = vector.multi_reduction <maximumf>, %106, %cst_55 [0] : vector<16x32xf32> to vector<32xf32>
    %108 = vector.shape_cast %107 : vector<32xf32> to vector<1x32xf32>
    %c1_i32 = arith.constant 1 : i32
    %109 = vector.broadcast %c1_i32 : i32 to vector<2x1xi32>
    %110 = arith.cmpi eq, %80, %109 : vector<2x1xi32>
    %cst_56 = arith.constant 1.000000e+00 : f32
    %cst_57 = arith.constant 0.000000e+00 : f32
    %111 = vector.broadcast %cst_56 : f32 to vector<2x1xf32>
    %112 = vector.broadcast %cst_57 : f32 to vector<2x1xf32>
    %113 = arith.select %110, %111, %112 : vector<2x1xi1>, vector<2x1xf32>
    %114 = vector.broadcast %113 : vector<2x1xf32> to vector<2x32xf32>
    %115 = vector.broadcast %108 : vector<1x32xf32> to vector<2x32xf32>
    %116 = arith.mulf %114, %115 : vector<2x32xf32>
    %117 = arith.addf %99, %116 : vector<2x32xf32>
    %cst_58 = arith.constant dense<0.000000e+00> : vector<16x32xf32>
    %118 = tpu.matmul %32, %21, %cst_58 {dimension_numbers = #tpu.dot_dimension_numbers<[1], [0], [0], [1], [0, 0, 1, 1], [], []>} : vector<16x16xf32>, vector<16x32xf32>, vector<16x32xf32> -> vector<16x32xf32>
    %cst_59 = arith.constant dense<0.000000e+00> : vector<16x32xf32>
    %119 = tpu.matmul %3, %118, %cst_59 {dimension_numbers = #tpu.dot_dimension_numbers<[1], [0], [0], [1], [0, 0, 1, 1], [], []>} : vector<16x16xf32>, vector<16x32xf32>, vector<16x32xf32> -> vector<16x32xf32>
    %120 = vector.broadcast %22 : vector<1x32xf32> to vector<16x32xf32>
    %121 = arith.addf %119, %120 : vector<16x32xf32>
    %cst_60 = arith.constant 0.000000e+00 : f32
    %122 = vector.broadcast %cst_60 : f32 to vector<16x32xf32>
    %123 = arith.maximumf %121, %122 : vector<16x32xf32>
    %cst_61 = arith.constant dense<0.000000e+00> : vector<16x1xf32>
    %124 = tpu.matmul %123, %23, %cst_61 {dimension_numbers = #tpu.dot_dimension_numbers<[1], [0], [0], [1], [0, 0, 1, 1], [], []>} : vector<16x32xf32>, vector<32x1xf32>, vector<16x1xf32> -> vector<16x1xf32>
    %cst_62 = arith.constant dense<0.000000e+00> : vector<16x1xf32>
    %125 = tpu.matmul %3, %124, %cst_62 {dimension_numbers = #tpu.dot_dimension_numbers<[1], [0], [0], [1], [0, 0, 1, 1], [], []>} : vector<16x16xf32>, vector<16x1xf32>, vector<16x1xf32> -> vector<16x1xf32>
    %126 = vector.broadcast %24 : vector<1x1xf32> to vector<16x1xf32>
    %127 = arith.addf %125, %126 : vector<16x1xf32>
    %128 = vector.broadcast %127 : vector<16x1xf32> to vector<16x16xf32>
    %129 = arith.mulf %128, %7 : vector<16x16xf32>
    %cst_63 = arith.constant dense<0.000000e+00> : vector<16xf32>
    %130 = vector.multi_reduction <add>, %129, %cst_63 [0] : vector<16x16xf32> to vector<16xf32>
    %131 = vector.shape_cast %130 : vector<16xf32> to vector<1x16xf32>
    %132 = vector.broadcast %131 : vector<1x16xf32> to vector<16x16xf32>
    %133 = vector.broadcast %127 : vector<16x1xf32> to vector<16x16xf32>
    %134 = arith.cmpf ogt, %132, %133 : vector<16x16xf32>
    %135 = vector.broadcast %131 : vector<1x16xf32> to vector<16x16xf32>
    %136 = vector.broadcast %127 : vector<16x1xf32> to vector<16x16xf32>
    %137 = arith.cmpf oeq, %135, %136 : vector<16x16xf32>
    %cst_64 = arith.constant 5.000000e-01 : f32
    %138 = vector.broadcast %cst_64 : f32 to vector<16x16xf32>
    %139 = arith.cmpf ogt, %9, %138 : vector<16x16xf32>
    %140 = arith.andi %137, %139 : vector<16x16xi1>
    %141 = arith.ori %134, %140 : vector<16x16xi1>
    %cst_65 = arith.constant 1.000000e+00 : f32
    %cst_66 = arith.constant 0.000000e+00 : f32
    %142 = vector.broadcast %cst_65 : f32 to vector<16x16xf32>
    %143 = vector.broadcast %cst_66 : f32 to vector<16x16xf32>
    %144 = arith.select %141, %142, %143 : vector<16x16xi1>, vector<16x16xf32>
    %145 = arith.mulf %5, %144 : vector<16x16xf32>
    %cst_67 = arith.constant dense<0.000000e+00> : vector<16xf32>
    %146 = vector.multi_reduction <add>, %145, %cst_67 [1] : vector<16x16xf32> to vector<16xf32>
    %147 = vector.shape_cast %146 : vector<16xf32> to vector<16x1xf32>
    %148 = arith.cmpf olt, %147, %13 : vector<16x1xf32>
    %cst_68 = arith.constant 1.000000e+00 : f32
    %cst_69 = arith.constant 0.000000e+00 : f32
    %149 = vector.broadcast %cst_68 : f32 to vector<16x1xf32>
    %150 = vector.broadcast %cst_69 : f32 to vector<16x1xf32>
    %151 = arith.select %148, %149, %150 : vector<16x1xi1>, vector<16x1xf32>
    %152 = math.tanh %127 : vector<16x1xf32>
    %153 = vector.broadcast %152 : vector<16x1xf32> to vector<16x32xf32>
    %154 = arith.mulf %123, %153 : vector<16x32xf32>
    %155 = vector.broadcast %151 : vector<16x1xf32> to vector<16x32xf32>
    %156 = arith.mulf %155, %154 : vector<16x32xf32>
    %cst_70 = arith.constant dense<0.000000e+00> : vector<2x32xf32>
    %157 = tpu.matmul %16, %156, %cst_70 {dimension_numbers = #tpu.dot_dimension_numbers<[1], [0], [0], [1], [0, 0, 1, 1], [], []>} : vector<2x16xf32>, vector<16x32xf32>, vector<2x32xf32> -> vector<2x32xf32>
    %cst_71 = arith.constant dense<0.000000e+00> : vector<2x1xf32>
    %158 = tpu.matmul %16, %151, %cst_71 {dimension_numbers = #tpu.dot_dimension_numbers<[1], [0], [0], [1], [0, 0, 1, 1], [], []>} : vector<2x16xf32>, vector<16x1xf32>, vector<2x1xf32> -> vector<2x1xf32>
    %cst_72 = arith.constant 1.000000e+00 : f32
    %159 = vector.broadcast %cst_72 : f32 to vector<2x1xf32>
    %160 = arith.maximumf %158, %159 : vector<2x1xf32>
    %161 = vector.broadcast %160 : vector<2x1xf32> to vector<2x32xf32>
    %162 = arith.divf %157, %161 : vector<2x32xf32>
    %163 = vector.broadcast %151 : vector<16x1xf32> to vector<16x2xf32>
    %164 = arith.mulf %12, %163 : vector<16x2xf32>
    %165 = tpu.iota {dimensions = array<i32: 0>} : vector<2x1xi32>
    %cst_73 = arith.constant 0.000000e+00 : f32
    %166 = vector.broadcast %cst_73 : f32 to vector<2x32xf32>
    %167 = vector.extract_strided_slice %164 {offsets = [0, 0], sizes = [16, 1], strides = [1, 1]} : vector<16x2xf32> to vector<16x1xf32>
    %cst_74 = arith.constant 5.000000e-01 : f32
    %168 = vector.broadcast %cst_74 : f32 to vector<16x1xf32>
    %169 = arith.cmpf ogt, %167, %168 : vector<16x1xf32>
    %cst_75 = arith.constant -1.000000e+30 : f32
    %170 = vector.shape_cast %169 : vector<16x1xi1> to vector<16x1xi1>
    %171 = vector.broadcast %170 : vector<16x1xi1> to vector<16x32xi1>
    %172 = vector.broadcast %cst_75 : f32 to vector<16x32xf32>
    %173 = arith.select %171, %154, %172 : vector<16x32xi1>, vector<16x32xf32>
    %cst_76 = arith.constant dense<0xFF800000> : vector<32xf32>
    %174 = vector.multi_reduction <maximumf>, %173, %cst_76 [0] : vector<16x32xf32> to vector<32xf32>
    %175 = vector.shape_cast %174 : vector<32xf32> to vector<1x32xf32>
    %c0_i32_77 = arith.constant 0 : i32
    %176 = vector.broadcast %c0_i32_77 : i32 to vector<2x1xi32>
    %177 = arith.cmpi eq, %165, %176 : vector<2x1xi32>
    %cst_78 = arith.constant 1.000000e+00 : f32
    %cst_79 = arith.constant 0.000000e+00 : f32
    %178 = vector.broadcast %cst_78 : f32 to vector<2x1xf32>
    %179 = vector.broadcast %cst_79 : f32 to vector<2x1xf32>
    %180 = arith.select %177, %178, %179 : vector<2x1xi1>, vector<2x1xf32>
    %181 = vector.broadcast %180 : vector<2x1xf32> to vector<2x32xf32>
    %182 = vector.broadcast %175 : vector<1x32xf32> to vector<2x32xf32>
    %183 = arith.mulf %181, %182 : vector<2x32xf32>
    %184 = arith.addf %166, %183 : vector<2x32xf32>
    %185 = vector.extract_strided_slice %164 {offsets = [0, 1], sizes = [16, 1], strides = [1, 1]} : vector<16x2xf32> to vector<16x1xf32>
    %cst_80 = arith.constant 5.000000e-01 : f32
    %186 = vector.broadcast %cst_80 : f32 to vector<16x1xf32>
    %187 = arith.cmpf ogt, %185, %186 : vector<16x1xf32>
    %cst_81 = arith.constant -1.000000e+30 : f32
    %188 = vector.shape_cast %187 : vector<16x1xi1> to vector<16x1xi1>
    %189 = vector.broadcast %188 : vector<16x1xi1> to vector<16x32xi1>
    %190 = vector.broadcast %cst_81 : f32 to vector<16x32xf32>
    %191 = arith.select %189, %154, %190 : vector<16x32xi1>, vector<16x32xf32>
    %cst_82 = arith.constant dense<0xFF800000> : vector<32xf32>
    %192 = vector.multi_reduction <maximumf>, %191, %cst_82 [0] : vector<16x32xf32> to vector<32xf32>
    %193 = vector.shape_cast %192 : vector<32xf32> to vector<1x32xf32>
    %c1_i32_83 = arith.constant 1 : i32
    %194 = vector.broadcast %c1_i32_83 : i32 to vector<2x1xi32>
    %195 = arith.cmpi eq, %165, %194 : vector<2x1xi32>
    %cst_84 = arith.constant 1.000000e+00 : f32
    %cst_85 = arith.constant 0.000000e+00 : f32
    %196 = vector.broadcast %cst_84 : f32 to vector<2x1xf32>
    %197 = vector.broadcast %cst_85 : f32 to vector<2x1xf32>
    %198 = arith.select %195, %196, %197 : vector<2x1xi1>, vector<2x1xf32>
    %199 = vector.broadcast %198 : vector<2x1xf32> to vector<2x32xf32>
    %200 = vector.broadcast %193 : vector<1x32xf32> to vector<2x32xf32>
    %201 = arith.mulf %199, %200 : vector<2x32xf32>
    %202 = arith.addf %184, %201 : vector<2x32xf32>
    %c0_86 = arith.constant 0 : index
    %c0_87 = arith.constant 0 : index
    %203 = vector.load %arg6[%c0_86, %c0_87] : memref<2x128xf32, #tpu.memory_space<vmem>>, vector<2x32xf32>
    tpu.vector_store %arg6[%c0_86, %c0_87], %117 {strides = array<i32>} : memref<2x128xf32, #tpu.memory_space<vmem>>, vector<2x32xf32>,
    %c0_88 = arith.constant 0 : index
    %c32 = arith.constant 32 : index
    %204 = vector.load %arg6[%c0_88, %c32] : memref<2x128xf32, #tpu.memory_space<vmem>>, vector<2x32xf32>
    tpu.vector_store %arg6[%c0_88, %c32], %77 {strides = array<i32>} : memref<2x128xf32, #tpu.memory_space<vmem>>, vector<2x32xf32>,
    %c0_89 = arith.constant 0 : index
    %c64 = arith.constant 64 : index
    %205 = vector.load %arg6[%c0_89, %c64] : memref<2x128xf32, #tpu.memory_space<vmem>>, vector<2x32xf32>
    tpu.vector_store %arg6[%c0_89, %c64], %202 {strides = array<i32>} : memref<2x128xf32, #tpu.memory_space<vmem>>, vector<2x32xf32>,
    %c0_90 = arith.constant 0 : index
    %c96 = arith.constant 96 : index
    %206 = vector.load %arg6[%c0_90, %c96] : memref<2x128xf32, #tpu.memory_space<vmem>>, vector<2x32xf32>
    tpu.vector_store %arg6[%c0_90, %c96], %162 {strides = array<i32>} : memref<2x128xf32, #tpu.memory_space<vmem>>, vector<2x32xf32>,
    %c0_91 = arith.constant 0 : index
    %c0_92 = arith.constant 0 : index
    %207 = vector.load %arg6[%c0_91, %c0_92] : memref<2x128xf32, #tpu.memory_space<vmem>>, vector<2x128xf32>
    %cst_93 = arith.constant dense<0.000000e+00> : vector<2x32xf32>
    %208 = tpu.matmul %207, %25, %cst_93 {dimension_numbers = #tpu.dot_dimension_numbers<[1], [0], [0], [1], [0, 0, 1, 1], [], []>} : vector<2x128xf32>, vector<128x32xf32>, vector<2x32xf32> -> vector<2x32xf32>
    %209 = vector.broadcast %26 : vector<1x32xf32> to vector<2x32xf32>
    %210 = arith.addf %208, %209 : vector<2x32xf32>
    %cst_94 = arith.constant 0.000000e+00 : f32
    %211 = vector.broadcast %cst_94 : f32 to vector<2x32xf32>
    %212 = arith.maximumf %210, %211 : vector<2x32xf32>
    %cst_95 = arith.constant dense<0.000000e+00> : vector<2x128xf32>
    %213 = tpu.matmul %212, %27, %cst_95 {dimension_numbers = #tpu.dot_dimension_numbers<[1], [0], [0], [1], [0, 0, 1, 1], [], []>} : vector<2x32xf32>, vector<32x128xf32>, vector<2x128xf32> -> vector<2x128xf32>
    %214 = vector.broadcast %28 : vector<1x128xf32> to vector<2x128xf32>
    %215 = arith.addf %213, %214 : vector<2x128xf32>
    %216 = tpu.iota {dimensions = array<i32: 1>} : vector<2x128xi32>
    %c3_i32 = arith.constant 3 : i32
    %217 = vector.broadcast %c3_i32 : i32 to vector<2x128xi32>
    %218 = arith.cmpi slt, %216, %217 : vector<2x128xi32>
    %cst_96 = arith.constant -1.000000e+30 : f32
    %219 = vector.broadcast %cst_96 : f32 to vector<2x128xf32>
    %220 = arith.select %218, %215, %219 : vector<2x128xi1>, vector<2x128xf32>
    %cst_97 = arith.constant dense<0xFF800000> : vector<2xf32>
    %221 = vector.multi_reduction <maximumf>, %220, %cst_97 [1] : vector<2x128xf32> to vector<2xf32>
    %222 = vector.shape_cast %221 : vector<2xf32> to vector<2x1xf32>
    %223 = vector.broadcast %222 : vector<2x1xf32> to vector<2x128xf32>
    %224 = arith.subf %220, %223 : vector<2x128xf32>
    %225 = math.exp %224 : vector<2x128xf32>
    %cst_98 = arith.constant dense<0.000000e+00> : vector<2xf32>
    %226 = vector.multi_reduction <add>, %225, %cst_98 [1] : vector<2x128xf32> to vector<2xf32>
    %227 = vector.shape_cast %226 : vector<2xf32> to vector<2x1xf32>
    %228 = math.log %227 : vector<2x1xf32>
    %229 = arith.addf %222, %228 : vector<2x1xf32>
    %230 = vector.broadcast %229 : vector<2x1xf32> to vector<2x128xf32>
    %231 = arith.subf %220, %230 : vector<2x128xf32>
    %c0_99 = arith.constant 0 : index
    %c0_100 = arith.constant 0 : index
    %c0_101 = arith.constant 0 : index
    %232 = vector.load %arg5[%c0_99, %c0_100, %c0_101] : memref<1x2x128xf32, #tpu.memory_space<vmem>>, vector<1x2x128xf32>
    %233 = vector.shape_cast %232 : vector<1x2x128xf32> to vector<2x128xf32>
    %234 = vector.shape_cast %231 : vector<2x128xf32> to vector<1x2x128xf32>
    tpu.vector_store %arg5[%c0_99, %c0_100, %c0_101], %234 {strides = array<i32>} : memref<1x2x128xf32, #tpu.memory_space<vmem>>, vector<1x2x128xf32>,
    return
  }
  func.func @transform_0(%arg0: i32) -> (i32, i32, i32) {
    %c0_i32 = arith.constant 0 : i32
    %c0_i32_0 = arith.constant 0 : i32
    %c0_i32_1 = arith.constant 0 : i32
    %c0_i32_2 = arith.constant 0 : i32
    return %c0_i32, %c0_i32_0, %c0_i32_1 : i32, i32, i32
  }
  func.func @transform_1(%arg0: i32) -> (i32, i32) {
    %c0_i32 = arith.constant 0 : i32
    %c0_i32_0 = arith.constant 0 : i32
    %c0_i32_1 = arith.constant 0 : i32
    return %c0_i32, %c0_i32_0 : i32, i32
  }
  func.func @transform_2(%arg0: i32) -> (i32, i32, i32) {
    %c0_i32 = arith.constant 0 : i32
    %c0_i32_0 = arith.constant 0 : i32
    %c0_i32_1 = arith.constant 0 : i32
    return %arg0, %c0_i32, %c0_i32_0 : i32, i32, i32
  }
  func.func @transform_3(%arg0: i32) -> (i32, i32, i32) {
    %c0_i32 = arith.constant 0 : i32
    %c0_i32_0 = arith.constant 0 : i32
    %c0_i32_1 = arith.constant 0 : i32
    return %arg0, %c0_i32, %c0_i32_0 : i32, i32, i32
  }
  func.func @transform_4(%arg0: i32) -> (i32, i32, i32) {
    %c0_i32 = arith.constant 0 : i32
    %c0_i32_0 = arith.constant 0 : i32
    %c0_i32_1 = arith.constant 0 : i32
    return %arg0, %c0_i32, %c0_i32_0 : i32, i32, i32
  }
}

</mosaic_0001>

<llo_original>
// kernel: forward.1
$region0: #{forward.1}
  #allocation0 [shape = 'u32[]', space=smem, size = 0x4, offset = 0x4, fixed_abs, tag = 'smem constant byte address 0x4 - core index']
  #allocation1 [shape = 'u32[144,128]{1,0:T(1,128)}', space=vmem, size = 0x12000, scoped, tag = 'internal scratch']
  #allocation2 [shape = 'f32[2,128]{1,0:T(2,128)}', space=vmem, size = 0x400, scoped, tag = 'scratch operand']
  %s0 = inlined_call_operand.hbm [shape: f32[7,16,16], index: 0, kind: input, shape index: {}]
  %s1 = inlined_call_operand.hbm [shape: f32[296,128], index: 1, kind: input, shape index: {}]
  %s2 = inlined_call_operand.vmem [shape: f32[8,16,4], index: 2, kind: input, shape index: {}]
  %s3 = inlined_call_operand.vmem [shape: f32[8,16,16], index: 3, kind: input, shape index: {}]
  %s4 = inlined_call_operand.vmem [shape: f32[8,2,128], index: 4, kind: output, shape index: {}]
  %s5 = sld [smem:[#allocation0]]
  $region57: #{forward.1} parent=0
    _
  %s7 = ssub.s32 1, %s5
  %s8 = scalar_select 0, %s7, %s5
  $region1: #{forward.1} parent=0
    #allocation3 [shape = 'u8[57344]{0}', space=vmem, size = 0xe000, scoped, tag = 'input window, operand 0, single buffered']
    #allocation4 [shape = 's32[2]{0}', space=sflag, size = 0x8, scoped, tag = 'scoped memory for forward.1']
    #allocation5 [shape = 'u8[151552]{0}', space=vmem, size = 0x25000, scoped, tag = 'input window, operand 1, single buffered']
    #allocation6 [shape = 's32[1]{0}', space=sflag, size = 0x4, scoped, tag = 'scoped memory for forward.1']
    %9 = vsyncpa [#allocation4], 0
    %10 = vsyncpa [#allocation6], 0
    loop: start=0, step=1, limit=10
    $region2: #{forward.1} parent=1 // loop_pre_header
      _
    $region3: #{forward.1} parent=1 // loop_header
      %s12 = sphi 0, %s16
      %p13 = scmp.ge.s32.totalorder %s12, 10
      %s20 = sphi 0, %s20
      %s22 = sphi 0, %s20
      %s23 = sphi 0, %s22
      %s37 = sphi 0, %s23
      %s41 = sphi 0, %s41
      %s43 = sphi 0, %s41
      %s44 = sphi 0, %s43
      %s58 = sphi 0, %s44
      %s64 = sphi 0, %s66
      %s67 = sphi 0, %s64
      %s68 = sphi 0, %s67
      %s84 = sphi 0, %s68
      %s90 = sphi 0, %s92
      %s93 = sphi 0, %s90
      %s94 = sphi 0, %s93
      %s110 = sphi 0, %s94
      %s116 = sphi 0, %s118
      %s119 = sphi 0, %s116
      %s120 = sphi 0, %s119
      %s136 = sphi 0, %s120
    $region4: #{forward.1} parent=1 // loop_header_branch
      %15 = sbr.rel (%p13) target = $region8
    $region5: #{forward.1} parent=1 // loop_body
      %s17 = ssub.s32 %s12, 1
      %s18 = ssub.s32 %s12, 2
      %s19 = sadd.s32 %s12, 1
      %s21 = sadd.s32 %s20, 1
      %p24 = scmp.eq.s32.totalorder %s12, 7
      %p25 = scmp.ne.s32.totalorder %s20, %s22
      %p26 = scmp.eq.s32.totalorder %s12, 0
      %p27 = por %p25, %p26
      %p28 = scmp.ne.s32.totalorder %s20, %s22
      %p29 = scmp.eq.s32.totalorder %s17, 7
      %p30 = por %p28, %p29
      %p31 = scmp.ne.s32.totalorder %s22, %s23
      %p32 = scmp.eq.s32.totalorder %s17, 0
      %p33 = por %p31, %p32
      %p34 = scmp.ne.s32.totalorder %s22, %s23
      %p35 = scmp.eq.s32.totalorder %s18, 7
      %p36 = por %p34, %p35
      %p38 = scmp.ne.s32.totalorder %s23, %s37
      %p39 = scmp.eq.s32.totalorder %s18, 0
      %p40 = por %p38, %p39
      %s42 = sadd.s32 %s41, 1
      %p45 = scmp.eq.s32.totalorder %s12, 7
      %p46 = scmp.ne.s32.totalorder %s41, %s43
      %p47 = scmp.eq.s32.totalorder %s12, 0
      %p48 = por %p46, %p47
      %p49 = scmp.ne.s32.totalorder %s41, %s43
      %p50 = scmp.eq.s32.totalorder %s17, 7
      %p51 = por %p49, %p50
      %p52 = scmp.ne.s32.totalorder %s43, %s44
      %p53 = scmp.eq.s32.totalorder %s17, 0
      %p54 = por %p52, %p53
      %p55 = scmp.ne.s32.totalorder %s43, %s44
      %p56 = scmp.eq.s32.totalorder %s18, 7
      %p57 = por %p55, %p56
      %p59 = scmp.ne.s32.totalorder %s44, %s58
      %p60 = scmp.eq.s32.totalorder %s18, 0
      %p61 = por %p59, %p60
      %s62 = ssub.s32 %s12, %s19
      %p63 = scmp.eq.s32.totalorder %s62, 0
      %s65 = sadd.s32 %s64, 1
      %s66 = scalar_select %p63, %s64, %s65
      %p69 = pneg %p63
      %p70 = scmp.eq.s32.totalorder %s12, 7
      %p71 = por %p69, %p70
      %p72 = scmp.ne.s32.totalorder %s64, %s67
      %p73 = scmp.eq.s32.totalorder %s12, 0
      %p74 = por %p72, %p73
      %p75 = scmp.ne.s32.totalorder %s64, %s67
      %p76 = scmp.eq.s32.totalorder %s17, 7
      %p77 = por %p75, %p76
      %p78 = scmp.ne.s32.totalorder %s67, %s68
      %p79 = scmp.eq.s32.totalorder %s17, 0
      %p80 = por %p78, %p79
      %p81 = scmp.ne.s32.totalorder %s67, %s68
      %p82 = scmp.eq.s32.totalorder %s18, 7
      %p83 = por %p81, %p82
      %p85 = scmp.ne.s32.totalorder %s68, %s84
      %p86 = scmp.eq.s32.totalorder %s18, 0
      %p87 = por %p85, %p86
      %s88 = ssub.s32 %s12, %s19
      %p89 = scmp.eq.s32.totalorder %s88, 0
      %s91 = sadd.s32 %s90, 1
      %s92 = scalar_select %p89, %s90, %s91
      %p95 = pneg %p89
      %p96 = scmp.eq.s32.totalorder %s12, 7
      %p97 = por %p95, %p96
      %p98 = scmp.ne.s32.totalorder %s90, %s93
      %p99 = scmp.eq.s32.totalorder %s12, 0
      %p100 = por %p98, %p99
      %p101 = scmp.ne.s32.totalorder %s90, %s93
      %p102 = scmp.eq.s32.totalorder %s17, 7
      %p103 = por %p101, %p102
      %p104 = scmp.ne.s32.totalorder %s93, %s94
      %p105 = scmp.eq.s32.totalorder %s17, 0
      %p106 = por %p104, %p105
      %p107 = scmp.ne.s32.totalorder %s93, %s94
      %p108 = scmp.eq.s32.totalorder %s18, 7
      %p109 = por %p107, %p108
      %p111 = scmp.ne.s32.totalorder %s94, %s110
      %p112 = scmp.eq.s32.totalorder %s18, 0
      %p113 = por %p111, %p112
      %s114 = ssub.s32 %s12, %s19
      %p115 = scmp.eq.s32.totalorder %s114, 0
      %s117 = sadd.s32 %s116, 1
      %s118 = scalar_select %p115, %s116, %s117
      %p121 = pneg %p115
      %p122 = scmp.eq.s32.totalorder %s12, 7
      %p123 = por %p121, %p122
      %p124 = scmp.ne.s32.totalorder %s116, %s119
      %p125 = scmp.eq.s32.totalorder %s12, 0
      %p126 = por %p124, %p125
      %p127 = scmp.ne.s32.totalorder %s116, %s119
      %p128 = scmp.eq.s32.totalorder %s17, 7
      %p129 = por %p127, %p128
      %p130 = scmp.ne.s32.totalorder %s119, %s120
      %p131 = scmp.eq.s32.totalorder %s17, 0
      %p132 = por %p130, %p131
      %p133 = scmp.ne.s32.totalorder %s119, %s120
      %p134 = scmp.eq.s32.totalorder %s18, 7
      %p135 = por %p133, %p134
      %p137 = scmp.ne.s32.totalorder %s120, %s136
      %p138 = scmp.eq.s32.totalorder %s18, 0
      %p139 = por %p137, %p138
      %p140 = scmp.le.s32.totalorder 1, %s12
      %p141 = scmp.lt.s32.totalorder %s12, 9
      %p142 = pnand %p140, %p141
      %p143 = pneg %p142
      // Predicated region
      $region9: #{forward.1} parent=5 // pred_check
        _
      $region10: #{forward.1} parent=5 // pred_check_branch
        %145 = sbr.rel (%p142) target = $region12
      $region11: #{forward.1} parent=5 // pred_region
        %s146 = ssub.s32 %s12, 1
        // Predicated region
        $region13: #{forward.1} parent=11 // pred_check
          %p147 = pneg %p33
        $region14: #{forward.1} parent=11 // pred_check_branch
          %149 = sbr.rel (%p147) target = $region16
        $region15: #{forward.1} parent=11 // pred_region
          %s151 = ssub.s32 1792, 1792
          %152 = vsyncadd [#allocation4], %s151
          %s153 = sshll.u32 [#allocation3], 4
          %s154 = int_to_ptr.vmem [resolvable:$true] %s153
          %159 = dma.hbm_to_vmem [thread:$0]  %s0, 1792, %s154, [#allocation4], 128, 128, 8
        $region16: #{forward.1} parent=11 // pred_fallthru
          _
        // Predicated region
        $region17: #{forward.1} parent=11 // pred_check
          %p160 = pneg %p54
        $region18: #{forward.1} parent=11 // pred_check_branch
          %162 = sbr.rel (%p160) target = $region20
        $region19: #{forward.1} parent=11 // pred_region
          %s164 = ssub.s32 4736, 4736
          %165 = vsyncadd [#allocation6], %s164
          %s166 = sshll.u32 [#allocation5], 4
          %s167 = int_to_ptr.vmem [resolvable:$true] %s166
          %172 = dma.hbm_to_vmem [thread:$0]  %s1, 4736, %s167, [#allocation6], 128, 128, 8
        $region20: #{forward.1} parent=11 // pred_fallthru
          _
      $region12: #{forward.1} parent=5 // pred_fallthru
        _
      %p173 = scmp.lt.s32.totalorder %s12, 8
      // Predicated region
      $region21: #{forward.1} parent=5 // pred_check
        %p174 = pneg %p173
      $region22: #{forward.1} parent=5 // pred_check_branch
        %176 = sbr.rel (%p174) target = $region24
      $region23: #{forward.1} parent=5 // pred_region
        // Predicated region
        $region25: #{forward.1} parent=23 // pred_check
          %p177 = pneg %p74
        $region26: #{forward.1} parent=23 // pred_check_branch
          %179 = sbr.rel (%p177) target = $region28
        $region27: #{forward.1} parent=23 // pred_region
          %p180 = scmp.lt.s32.totalorder %s12, 7
          %s181 = scalar_select %p180, %s12, 7
          %s182 = smul.addr %s181, 2
          %s183 = smul.addr %s182, 8
          %s184 = scalar_lea.vmem %s2, %s183
        $region28: #{forward.1} parent=23 // pred_fallthru
          _
        // Predicated region
        $region29: #{forward.1} parent=23 // pred_check
          %p185 = pneg %p100
        $region30: #{forward.1} parent=23 // pred_check_branch
          %187 = sbr.rel (%p185) target = $region32
        $region31: #{forward.1} parent=23 // pred_region
          %p188 = scmp.lt.s32.totalorder %s12, 7
          %s189 = scalar_select %p188, %s12, 7
          %s190 = smul.addr %s189, 2
          %s191 = smul.addr %s190, 8
          %s192 = scalar_lea.vmem %s3, %s191
        $region32: #{forward.1} parent=23 // pred_fallthru
          _
      $region24: #{forward.1} parent=5 // pred_fallthru
        _
      %p193 = scmp.le.s32.totalorder 1, %s12
      %p194 = scmp.lt.s32.totalorder %s12, 9
      %p195 = pnand %p193, %p194
      %p196 = pneg %p195
      // Predicated region
      $region33: #{forward.1} parent=5 // pred_check
        _
      $region34: #{forward.1} parent=5 // pred_check_branch
        %198 = sbr.rel (%p195) target = $region36
      $region35: #{forward.1} parent=5 // pred_region
        %s199 = ssub.s32 %s12, 1
        // Predicated region
        $region37: #{forward.1} parent=35 // pred_check
          %p200 = pneg %p33
        $region38: #{forward.1} parent=35 // pred_check_branch
          %202 = sbr.rel (%p200) target = $region40
        $region39: #{forward.1} parent=35 // pred_region
          %203 = dma.done [#allocation4], 1792
        $region40: #{forward.1} parent=35 // pred_fallthru
          _
        // Predicated region
        $region41: #{forward.1} parent=35 // pred_check
          %p204 = pneg %p54
        $region42: #{forward.1} parent=35 // pred_check_branch
          %206 = sbr.rel (%p204) target = $region44
        $region43: #{forward.1} parent=35 // pred_region
          %207 = dma.done [#allocation6], 4736
        $region44: #{forward.1} parent=35 // pred_fallthru
          _
        %p208 = pneg %p33
        %p209 = pneg %p30
        %p210 = pneg %p54
        %p211 = pneg %p51
        %p212 = scmp.lt.s32.totalorder %s17, 7
        %s213 = scalar_select %p212, %s17, 7
        %s214 = smul.addr %s213, 2
        %s215 = smul.addr %s214, 8
        %s216 = scalar_lea.vmem %s2, %s215
        %p217 = pneg %p80
        %p218 = pneg %p77
        %p219 = scmp.lt.s32.totalorder %s17, 7
        %s220 = scalar_select %p219, %s17, 7
        %s221 = smul.addr %s220, 2
        %s222 = smul.addr %s221, 8
        %s223 = scalar_lea.vmem %s3, %s222
        %p224 = pneg %p106
        %p225 = pneg %p103
        %p226 = pneg %p132
        %p227 = pneg %p129
        %p228 = scmp.lt.s32.totalorder %s17, 7
        %s229 = scalar_select %p228, %s17, 7
        %s230 = smul.addr %s229, 2
        %s231 = scalar_lea.vmem %s4, %s230
        %p232 = scmp.lt.s32.totalorder %s17, 7
        %s233 = scalar_select %p232, %s17, 7
        %s234 = smul.addr %s233, 2
        %s235 = smul.addr %s234, 8
        %s236 = scalar_lea.vmem %s2, %s235
        %p237 = scmp.lt.s32.totalorder %s17, 7
        %s238 = scalar_select %p237, %s17, 7
        %s239 = smul.addr %s238, 2
        %s240 = smul.addr %s239, 8
        %s241 = scalar_lea.vmem %s3, %s240
        %p242 = scmp.lt.s32.totalorder %s17, 7
        %s243 = scalar_select %p242, %s17, 7
        %s244 = smul.addr %s243, 2
        %s245 = scalar_lea.vmem %s4, %s244
        %v246 = vld [vmem:[#allocation3] sm:$0xff]
        %v247 = vld [vmem:[#allocation3 + $0x8] sm:$0xff]
        %s248 = scalar_lea.vmem [#allocation3], 16
        %v249 = vld [vmem:[%s248] sm:$0xff]
        %v250 = vld [vmem:[%s248 + $0x8] sm:$0xff]
        %s251 = scalar_lea.vmem [#allocation3], 32
        %v252 = vld [vmem:[%s251] sm:$0xff]
        %v253 = vld [vmem:[%s251 + $0x8] sm:$0xff]
        %s254 = scalar_lea.vmem [#allocation3], 48
        %v255 = vld [vmem:[%s254] sm:$0xff]
        %v256 = vld [vmem:[%s254 + $0x8] sm:$0xff]
        %s257 = scalar_lea.vmem [#allocation3], 64
        %v258 = vld [vmem:[%s257] sm:$0xff]
        %v259 = vld [vmem:[%s257 + $0x8] sm:$0xff]
        %s260 = scalar_lea.vmem [#allocation3], 80
        %v261 = vld [vmem:[%s260] sm:$0xff]
        %v262 = vld [vmem:[%s260 + $0x8] sm:$0xff]
        %s263 = scalar_lea.vmem [#allocation3], 96
        %v264 = vld [vmem:[%s263] sm:$0xff]
        %v265 = vld [vmem:[#allocation5] sm:$0xf]
        %v266 = vld [vmem:[#allocation5 + $0x8] sm:$0x1]
        %v267 = vld [vmem:[#allocation5 + $0x10] sm:$0xff]
        %v268 = vld [vmem:[#allocation5 + $0x18] sm:$0xff]
        %v269 = vld [vmem:[#allocation5 + $0x20] sm:$0xff]
        %v270 = vld [vmem:[#allocation5 + $0x28] sm:$0xff]
        %v271 = vld [vmem:[#allocation5 + $0x30] sm:$0x1]
        %v272 = vld [vmem:[#allocation5 + $0x38] sm:$0xff]
        %v273 = vld [vmem:[#allocation5 + $0x40] sm:$0xff]
        %v274 = vld [vmem:[#allocation5 + $0x48] sm:$0x1]
        %v275 = vld [vmem:[#allocation5 + $0x50] sm:$0xff]
        %v276 = vld [vmem:[#allocation5 + $0x58] sm:$0xff]
        %v277 = vld [vmem:[#allocation5 + $0x60] sm:$0xff]
        %v278 = vld [vmem:[#allocation5 + $0x68] sm:$0xff]
        %v279 = vld [vmem:[#allocation5 + $0x70] sm:$0x1]
        %v280 = vld [vmem:[#allocation5 + $0x78] sm:$0xff]
        %v281 = vld [vmem:[#allocation5 + $0x80] sm:$0xff]
        %v282 = vld [vmem:[#allocation5 + $0x88] sm:$0xff]
        %v283 = vld [vmem:[#allocation5 + $0x90] sm:$0xff]
        %v284 = vld [vmem:[#allocation5 + $0x98] sm:$0xff]
        %v285 = vld [vmem:[#allocation5 + $0xa0] sm:$0xff]
        %v286 = vld [vmem:[#allocation5 + $0xa8] sm:$0xff]
        %v287 = vld [vmem:[#allocation5 + $0xb0] sm:$0xff]
        %v288 = vld [vmem:[#allocation5 + $0xb8] sm:$0xff]
        %v289 = vld [vmem:[#allocation5 + $0xc0] sm:$0xff]
        %v290 = vld [vmem:[#allocation5 + $0xc8] sm:$0xff]
        %v291 = vld [vmem:[#allocation5 + $0xd0] sm:$0xff]
        %v292 = vld [vmem:[#allocation5 + $0xd8] sm:$0xff]
        %v293 = vld [vmem:[#allocation5 + $0xe0] sm:$0xff]
        %v294 = vld [vmem:[#allocation5 + $0xe8] sm:$0xff]
        %v295 = vld [vmem:[#allocation5 + $0xf0] sm:$0xff]
        %v296 = vld [vmem:[#allocation5 + $0xf8] sm:$0x1]
        %v297 = vld [vmem:[#allocation5 + $0x100] sm:$0xff]
        %v298 = vld [vmem:[#allocation5 + $0x108] sm:$0xff]
        %v299 = vld [vmem:[#allocation5 + $0x110] sm:$0xff]
        %v300 = vld [vmem:[#allocation5 + $0x118] sm:$0xff]
        %v301 = vld [vmem:[#allocation5 + $0x120] sm:$0x1]
        %v302 = vld [vmem:[%s236] sm:$0xff]
        %v303 = vld [vmem:[%s236 + $0x8] sm:$0xff]
        %v304 = vld [vmem:[%s241] sm:$0xff]
        %v305 = vld [vmem:[%s241 + $0x8] sm:$0xff]
        %vm306 = vcmask 31744
        %v308 = vsel %vm306, %v302, 0
        %v311 = vsel %vm306, %v303, 0
        %vm313 = vcmask 1043456
        %v315 = vsel %vm313, %v265, 0
        %317 = vmatprep.subr.mxu0 0.0
        %318 = vmatpush1.msra.mxu0 %v315
        %319 = vmatprep.subr.mxu0 0.0
        %320 = vmatpush1.msra.mxu0 0.0
        %321 = vmatprep.subr.mxu0 0.0
        %322 = vmatpush1.msra.mxu0 0.0
        %323 = vmatprep.subr.mxu0 0.0
        %324 = vmatpush1.msra.mxu0 0.0
        %325 = vmatprep.subr.mxu0 0.0
        %326 = vmatpush1.msra.mxu0 0.0
        %327 = vmatprep.subr.mxu0 0.0
        %328 = vmatpush1.msra.mxu0 0.0
        %329 = vmatprep.subr.mxu0 0.0
        %330 = vmatpush1.msra.mxu0 0.0
        %331 = vmatprep.subr.mxu0 0.0
        %332 = vmatpush1.msra.mxu0 0.0
        %333 = vmatprep.subr.mxu0 0.0
        %334 = vmatpush1.msra.mxu0 0.0
        %335 = vmatprep.subr.mxu0 0.0
        %336 = vmatpush1.msra.mxu0 0.0
        %337 = vmatprep.subr.mxu0 0.0
        %338 = vmatpush1.msra.mxu0 0.0
        %339 = vmatprep.subr.mxu0 0.0
        %340 = vmatpush1.msra.mxu0 0.0
        %341 = vmatprep.subr.mxu0 0.0
        %342 = vmatpush1.msra.mxu0 0.0
        %343 = vmatprep.subr.mxu0 0.0
        %344 = vmatpush1.msra.mxu0 0.0
        %345 = vmatprep.subr.mxu0 0.0
        %346 = vmatpush1.msra.mxu0 0.0
        %347 = vmatprep.subr.mxu0 0.0
        %348 = vmatpush1.msra.mxu0 0.0
        %349 = vmatprep.subr.mxu0 0.0
        %350 = vmatpush1.msra.mxu0 0.0
        %351 = vmatprep.subr.mxu0 0.0
        %352 = vmatpush1.msra.mxu0 0.0
        %353 = vmatprep.subr.mxu0 0.0
        %354 = vmatpush1.msra.mxu0 0.0
        %355 = vmatprep.subr.mxu0 0.0
        %356 = vmatpush1.msra.mxu0 0.0
        %357 = vmatprep.subr.mxu0 0.0
        %358 = vmatpush1.msra.mxu0 0.0
        %359 = vmatprep.subr.mxu0 0.0
        %360 = vmatpush1.msra.mxu0 0.0
        %361 = vmatprep.subr.mxu0 0.0
        %362 = vmatpush1.msra.mxu0 0.0
        %363 = vmatprep.subr.mxu0 0.0
        %364 = vmatpush1.msra.mxu0 0.0
        %365 = vmatprep.subr.mxu0 0.0
        %366 = vmatpush1.msra.mxu0 0.0
        %367 = vmatprep.subr.mxu0 0.0
        %368 = vmatpush1.msra.mxu0 0.0
        %369 = vmatprep.subr.mxu0 0.0
        %370 = vmatpush1.msra.mxu0 0.0
        %371 = vmatprep.subr.mxu0 0.0
        %372 = vmatpush1.msra.mxu0 0.0
        %373 = vmatprep.subr.mxu0 0.0
        %374 = vmatpush1.msra.mxu0 0.0
        %375 = vmatprep.subr.mxu0 0.0
        %376 = vmatpush1.msra.mxu0 0.0
        %377 = vmatprep.subr.mxu0 0.0
        %378 = vmatpush1.msra.mxu0 0.0
        %379 = vmatprep.subr.mxu0 0.0
        %380 = vmatpush1.msra.mxu0 0.0
        %381 = vmatprep.mubr.f32.mxu0 0.0
        %382 = vmatmul.mubr.f32.gmra.mrb[0].mxu0 %v308
        %v383 = vpop.f32.mrb[0].mxu0
        %v384 = vadd.f32 0.0, %v383
        %v385 = vpop.f32.mrb[0].mxu0
        %386 = vmatprep.mubr.f32.mxu0 0.0
        %387 = vmatmul.mubr.f32.gmra.mrb[0].mxu0 %v311
        %v388 = vpop.f32.mrb[0].mxu0
        %v389 = vadd.f32 0.0, %v388
        %v390 = vpop.f32.mrb[0].mxu0
        %391 = vdwg.mxu0
        %v392 = vlaneseq
        %v393 = vshrl.u32 %v392, 7
        %v394 = vsub.s32 0, %v393
        %v395 = vrot.slane %v266, %v394
        %vm396 = vcmask 130048
        %v398 = vsel %vm396, %v246, 0
        %v401 = vsel %vm396, %v247, 0
        %403 = vmatprep.subr.mxu0 0.0
        %404 = vmatpush1.msra.mxu0 %v384
        %405 = vmatprep.subr.mxu0 0.0
        %406 = vmatpush1.msra.mxu0 %v389
        %407 = vmatprep.subr.mxu0 0.0
        %408 = vmatpush1.msra.mxu0 0.0
        %409 = vmatprep.subr.mxu0 0.0
        %410 = vmatpush1.msra.mxu0 0.0
        %411 = vmatprep.subr.mxu0 0.0
        %412 = vmatpush1.msra.mxu0 0.0
        %413 = vmatprep.subr.mxu0 0.0
        %414 = vmatpush1.msra.mxu0 0.0
        %415 = vmatprep.subr.mxu0 0.0
        %416 = vmatpush1.msra.mxu0 0.0
        %417 = vmatprep.subr.mxu0 0.0
        %418 = vmatpush1.msra.mxu0 0.0
        %419 = vmatprep.subr.mxu0 0.0
        %420 = vmatpush1.msra.mxu0 0.0
        %421 = vmatprep.subr.mxu0 0.0
        %422 = vmatpush1.msra.mxu0 0.0
        %423 = vmatprep.subr.mxu0 0.0
        %424 = vmatpush1.msra.mxu0 0.0
        %425 = vmatprep.subr.mxu0 0.0
        %426 = vmatpush1.msra.mxu0 0.0
        %427 = vmatprep.subr.mxu0 0.0
        %428 = vmatpush1.msra.mxu0 0.0
        %429 = vmatprep.subr.mxu0 0.0
        %430 = vmatpush1.msra.mxu0 0.0
        %431 = vmatprep.subr.mxu0 0.0
        %432 = vmatpush1.msra.mxu0 0.0
        %433 = vmatprep.subr.mxu0 0.0
        %434 = vmatpush1.msra.mxu0 0.0
        %435 = vmatprep.subr.mxu0 0.0
        %436 = vmatpush1.msra.mxu0 0.0
        %437 = vmatprep.subr.mxu0 0.0
        %438 = vmatpush1.msra.mxu0 0.0
        %439 = vmatprep.subr.mxu0 0.0
        %440 = vmatpush1.msra.mxu0 0.0
        %441 = vmatprep.subr.mxu0 0.0
        %442 = vmatpush1.msra.mxu0 0.0
        %443 = vmatprep.subr.mxu0 0.0
        %444 = vmatpush1.msra.mxu0 0.0
        %445 = vmatprep.subr.mxu0 0.0
        %446 = vmatpush1.msra.mxu0 0.0
        %447 = vmatprep.subr.mxu0 0.0
        %448 = vmatpush1.msra.mxu0 0.0
        %449 = vmatprep.subr.mxu0 0.0
        %450 = vmatpush1.msra.mxu0 0.0
        %451 = vmatprep.subr.mxu0 0.0
        %452 = vmatpush1.msra.mxu0 0.0
        %453 = vmatprep.subr.mxu0 0.0
        %454 = vmatpush1.msra.mxu0 0.0
        %455 = vmatprep.subr.mxu0 0.0
        %456 = vmatpush1.msra.mxu0 0.0
        %457 = vmatprep.subr.mxu0 0.0
        %458 = vmatpush1.msra.mxu0 0.0
        %459 = vmatprep.subr.mxu0 0.0
        %460 = vmatpush1.msra.mxu0 0.0
        %461 = vmatprep.subr.mxu0 0.0
        %462 = vmatpush1.msra.mxu0 0.0
        %463 = vmatprep.subr.mxu0 0.0
        %464 = vmatpush1.msra.mxu0 0.0
        %465 = vmatprep.subr.mxu0 0.0
        %466 = vmatpush1.msra.mxu0 0.0
        %467 = vmatprep.mubr.f32.mxu0 0.0
        %468 = vmatmul.mubr.f32.gmra.mrb[0].mxu0 %v398
        %v469 = vpop.f32.mrb[0].mxu0
        %v470 = vadd.f32 %v395, %v469
        %v471 = vpop.f32.mrb[0].mxu0
        %472 = vmatprep.mubr.f32.mxu0 0.0
        %473 = vmatmul.mubr.f32.gmra.mrb[0].mxu0 %v401
        %v474 = vpop.f32.mrb[0].mxu0
        %v475 = vadd.f32 %v395, %v474
        %v476 = vpop.f32.mrb[0].mxu0
        %477 = vdwg.mxu0
        %v478 = vmax.f32 %v470, 0.0
        %v479 = vmax.f32 %v475, 0.0
        %vm480 = vcmask 261120
        %v482 = vsel %vm480, %v478, 0
        %v485 = vsel %vm480, %v479, 0
        %487 = vmatprep.subr.mxu0 0.0
        %488 = vmatpush1.msra.mxu0 %v267
        %489 = vmatprep.subr.mxu0 0.0
        %490 = vmatpush1.msra.mxu0 %v268
        %491 = vmatprep.subr.mxu0 0.0
        %492 = vmatpush1.msra.mxu0 %v269
        %493 = vmatprep.subr.mxu0 0.0
        %494 = vmatpush1.msra.mxu0 %v270
        %495 = vmatprep.subr.mxu0 0.0
        %496 = vmatpush1.msra.mxu0 0.0
        %497 = vmatprep.subr.mxu0 0.0
        %498 = vmatpush1.msra.mxu0 0.0
        %499 = vmatprep.subr.mxu0 0.0
        %500 = vmatpush1.msra.mxu0 0.0
        %501 = vmatprep.subr.mxu0 0.0
        %502 = vmatpush1.msra.mxu0 0.0
        %503 = vmatprep.subr.mxu0 0.0
        %504 = vmatpush1.msra.mxu0 0.0
        %505 = vmatprep.subr.mxu0 0.0
        %506 = vmatpush1.msra.mxu0 0.0
        %507 = vmatprep.subr.mxu0 0.0
        %508 = vmatpush1.msra.mxu0 0.0
        %509 = vmatprep.subr.mxu0 0.0
        %510 = vmatpush1.msra.mxu0 0.0
        %511 = vmatprep.subr.mxu0 0.0
        %512 = vmatpush1.msra.mxu0 0.0
        %513 = vmatprep.subr.mxu0 0.0
        %514 = vmatpush1.msra.mxu0 0.0
        %515 = vmatprep.subr.mxu0 0.0
        %516 = vmatpush1.msra.mxu0 0.0
        %517 = vmatprep.subr.mxu0 0.0
        %518 = vmatpush1.msra.mxu0 0.0
        %519 = vmatprep.subr.mxu0 0.0
        %520 = vmatpush1.msra.mxu0 0.0
        %521 = vmatprep.subr.mxu0 0.0
        %522 = vmatpush1.msra.mxu0 0.0
        %523 = vmatprep.subr.mxu0 0.0
        %524 = vmatpush1.msra.mxu0 0.0
        %525 = vmatprep.subr.mxu0 0.0
        %526 = vmatpush1.msra.mxu0 0.0
        %527 = vmatprep.subr.mxu0 0.0
        %528 = vmatpush1.msra.mxu0 0.0
        %529 = vmatprep.subr.mxu0 0.0
        %530 = vmatpush1.msra.mxu0 0.0
        %531 = vmatprep.subr.mxu0 0.0
        %532 = vmatpush1.msra.mxu0 0.0
        %533 = vmatprep.subr.mxu0 0.0
        %534 = vmatpush1.msra.mxu0 0.0
        %535 = vmatprep.subr.mxu0 0.0
        %536 = vmatpush1.msra.mxu0 0.0
        %537 = vmatprep.subr.mxu0 0.0
        %538 = vmatpush1.msra.mxu0 0.0
        %539 = vmatprep.subr.mxu0 0.0
        %540 = vmatpush1.msra.mxu0 0.0
        %541 = vmatprep.subr.mxu0 0.0
        %542 = vmatpush1.msra.mxu0 0.0
        %543 = vmatprep.subr.mxu0 0.0
        %544 = vmatpush1.msra.mxu0 0.0
        %545 = vmatprep.subr.mxu0 0.0
        %546 = vmatpush1.msra.mxu0 0.0
        %547 = vmatprep.subr.mxu0 0.0
        %548 = vmatpush1.msra.mxu0 0.0
        %549 = vmatprep.subr.mxu0 0.0
        %550 = vmatpush1.msra.mxu0 0.0
        %551 = vmatprep.mubr.f32.mxu0 0.0
        %552 = vmatmul.mubr.f32.gmra.mrb[0].mxu0 %v482
        %v553 = vpop.f32.mrb[0].mxu0
        %v554 = vadd.f32 0.0, %v553
        %v555 = vpop.f32.mrb[0].mxu0
        %556 = vmatprep.mubr.f32.mxu0 0.0
        %557 = vmatmul.mubr.f32.gmra.mrb[0].mxu0 %v485
        %v558 = vpop.f32.mrb[0].mxu0
        %v559 = vadd.f32 0.0, %v558
        %v560 = vpop.f32.mrb[0].mxu0
        %561 = vdwg.mxu0
        %v562 = vlaneseq
        %v563 = vshrl.u32 %v562, 7
        %v564 = vsub.s32 0, %v563
        %v565 = vrot.slane %v271, %v564
        %566 = vmatprep.subr.mxu0 0.0
        %567 = vmatpush1.msra.mxu0 %v554
        %568 = vmatprep.subr.mxu0 0.0
        %569 = vmatpush1.msra.mxu0 %v559
        %570 = vmatprep.subr.mxu0 0.0
        %571 = vmatpush1.msra.mxu0 0.0
        %572 = vmatprep.subr.mxu0 0.0
        %573 = vmatpush1.msra.mxu0 0.0
        %574 = vmatprep.subr.mxu0 0.0
        %575 = vmatpush1.msra.mxu0 0.0
        %576 = vmatprep.subr.mxu0 0.0
        %577 = vmatpush1.msra.mxu0 0.0
        %578 = vmatprep.subr.mxu0 0.0
        %579 = vmatpush1.msra.mxu0 0.0
        %580 = vmatprep.subr.mxu0 0.0
        %581 = vmatpush1.msra.mxu0 0.0
        %582 = vmatprep.subr.mxu0 0.0
        %583 = vmatpush1.msra.mxu0 0.0
        %584 = vmatprep.subr.mxu0 0.0
        %585 = vmatpush1.msra.mxu0 0.0
        %586 = vmatprep.subr.mxu0 0.0
        %587 = vmatpush1.msra.mxu0 0.0
        %588 = vmatprep.subr.mxu0 0.0
        %589 = vmatpush1.msra.mxu0 0.0
        %590 = vmatprep.subr.mxu0 0.0
        %591 = vmatpush1.msra.mxu0 0.0
        %592 = vmatprep.subr.mxu0 0.0
        %593 = vmatpush1.msra.mxu0 0.0
        %594 = vmatprep.subr.mxu0 0.0
        %595 = vmatpush1.msra.mxu0 0.0
        %596 = vmatprep.subr.mxu0 0.0
        %597 = vmatpush1.msra.mxu0 0.0
        %598 = vmatprep.subr.mxu0 0.0
        %599 = vmatpush1.msra.mxu0 0.0
        %600 = vmatprep.subr.mxu0 0.0
        %601 = vmatpush1.msra.mxu0 0.0
        %602 = vmatprep.subr.mxu0 0.0
        %603 = vmatpush1.msra.mxu0 0.0
        %604 = vmatprep.subr.mxu0 0.0
        %605 = vmatpush1.msra.mxu0 0.0
        %606 = vmatprep.subr.mxu0 0.0
        %607 = vmatpush1.msra.mxu0 0.0
        %608 = vmatprep.subr.mxu0 0.0
        %609 = vmatpush1.msra.mxu0 0.0
        %610 = vmatprep.subr.mxu0 0.0
        %611 = vmatpush1.msra.mxu0 0.0
        %612 = vmatprep.subr.mxu0 0.0
        %613 = vmatpush1.msra.mxu0 0.0
        %614 = vmatprep.subr.mxu0 0.0
        %615 = vmatpush1.msra.mxu0 0.0
        %616 = vmatprep.subr.mxu0 0.0
        %617 = vmatpush1.msra.mxu0 0.0
        %618 = vmatprep.subr.mxu0 0.0
        %619 = vmatpush1.msra.mxu0 0.0
        %620 = vmatprep.subr.mxu0 0.0
        %621 = vmatpush1.msra.mxu0 0.0
        %622 = vmatprep.subr.mxu0 0.0
        %623 = vmatpush1.msra.mxu0 0.0
        %624 = vmatprep.subr.mxu0 0.0
        %625 = vmatpush1.msra.mxu0 0.0
        %626 = vmatprep.subr.mxu0 0.0
        %627 = vmatpush1.msra.mxu0 0.0
        %628 = vmatprep.subr.mxu0 0.0
        %629 = vmatpush1.msra.mxu0 0.0
        %630 = vmatprep.mubr.f32.mxu0 0.0
        %631 = vmatmul.mubr.f32.gmra.mrb[0].mxu0 %v398
        %v632 = vpop.f32.mrb[0].mxu0
        %v633 = vadd.f32 %v565, %v632
        %v634 = vpop.f32.mrb[0].mxu0
        %635 = vmatprep.mubr.f32.mxu0 0.0
        %636 = vmatmul.mubr.f32.gmra.mrb[0].mxu0 %v401
        %v637 = vpop.f32.mrb[0].mxu0
        %v638 = vadd.f32 %v565, %v637
        %v639 = vpop.f32.mrb[0].mxu0
        %640 = vdwg.mxu0
        %642 = vset.pattern.permute.xlu0 0
        %643 = vperm.xlu0 %642, %v633
        %v644 = vpop.permute.xlu0 %643
        %647 = vset.pattern.permute.xlu0 0
        %648 = vperm.xlu0 %647, %v638
        %v649 = vpop.permute.xlu0 %648
        %v651 = vmul.f32 %v644, %v255
        %v652 = vmul.f32 %v649, %v256
        %v653 = vsel %vm396, %v651, 0.0
        %v654 = vsel %vm396, %v652, 0.0
        %v655 = vadd.f32 %v653, %v654
        %v656 = vrot.slane %v655, 4
        %v657 = vadd.f32 %v655, %v656
        %v658 = vrot.slane %v657, 2
        %v659 = vadd.f32 %v657, %v658
        %v660 = vrot.slane %v659, 1
        %v661 = vadd.f32 %v659, %v660
        %vm662 = vcmp.gt.f32.partialorder %v661, %v644
        %vm663 = vcmp.gt.f32.partialorder %v661, %v649
        %vm664 = vcmp.eq.f32.partialorder %v661, %v644
        %vm665 = vcmp.eq.f32.partialorder %v661, %v649
        %vm666 = vcmp.gt.f32.partialorder %v258, 0.5
        %vm667 = vcmp.gt.f32.partialorder %v259, 0.5
        %vm668 = vmand %vm664, %vm666
        %vm669 = vmand %vm665, %vm667
        %vm670 = vmor %vm662, %vm668
        %vm671 = vmor %vm663, %vm669
        %v672 = vsel %vm670, 1.0, 0.0
        %v673 = vsel %vm671, 1.0, 0.0
        %v674 = vmul.f32 %v252, %v672
        %v675 = vmul.f32 %v253, %v673
        %v676 = vsel %vm396, %v674, 0.0
        %677 = vadd.xlane.f32.xlu0 %v676
        %v678 = vpop.xlane.xlu0 %677
        %v679 = vsel %vm396, %v675, 0.0
        %680 = vadd.xlane.f32.xlu0 %v679
        %v681 = vpop.xlane.xlu0 %680
        %vm682 = vcmp.lt.f32.partialorder %v678, %v261
        %vm683 = vcmp.lt.f32.partialorder %v681, %v262
        %v684 = vsel %vm682, 1.0, 0.0
        %v685 = vsel %vm683, 1.0, 0.0
        %v686 = vtanh.pop %v633
        %v687 = vtanh.pop %v638
        %689 = vset.pattern.permute.xlu0 0
        %690 = vperm.xlu0 %689, %v686
        %v691 = vpop.permute.xlu0 %690
        %694 = vset.pattern.permute.xlu0 0
        %695 = vperm.xlu0 %694, %v687
        %v696 = vpop.permute.xlu0 %695
        %v698 = vmul.f32 %v478, %v691
        %v699 = vmul.f32 %v479, %v696
        %701 = vset.pattern.permute.xlu0 2
        %702 = vperm.xlu0 %701, %v684
        %v703 = vpop.permute.xlu0 %702
        %706 = vset.pattern.permute.xlu0 2
        %707 = vperm.xlu0 %706, %v685
        %v708 = vpop.permute.xlu0 %707
        %v710 = vmul.f32 %v703, %v698
        %v711 = vmul.f32 %v708, %v699
        %v713 = vsel %vm396, %v264, 0
        %715 = vmatprep.subr.mxu0 0.0
        %716 = vmatpush1.msra.mxu0 %v710
        %717 = vmatprep.subr.mxu0 0.0
        %718 = vmatpush1.msra.mxu0 %v711
        %719 = vmatprep.subr.mxu0 0.0
        %720 = vmatpush1.msra.mxu0 0.0
        %721 = vmatprep.subr.mxu0 0.0
        %722 = vmatpush1.msra.mxu0 0.0
        %723 = vmatprep.subr.mxu0 0.0
        %724 = vmatpush1.msra.mxu0 0.0
        %725 = vmatprep.subr.mxu0 0.0
        %726 = vmatpush1.msra.mxu0 0.0
        %727 = vmatprep.subr.mxu0 0.0
        %728 = vmatpush1.msra.mxu0 0.0
        %729 = vmatprep.subr.mxu0 0.0
        %730 = vmatpush1.msra.mxu0 0.0
        %731 = vmatprep.subr.mxu0 0.0
        %732 = vmatpush1.msra.mxu0 0.0
        %733 = vmatprep.subr.mxu0 0.0
        %734 = vmatpush1.msra.mxu0 0.0
        %735 = vmatprep.subr.mxu0 0.0
        %736 = vmatpush1.msra.mxu0 0.0
        %737 = vmatprep.subr.mxu0 0.0
        %738 = vmatpush1.msra.mxu0 0.0
        %739 = vmatprep.subr.mxu0 0.0
        %740 = vmatpush1.msra.mxu0 0.0
        %741 = vmatprep.subr.mxu0 0.0
        %742 = vmatpush1.msra.mxu0 0.0
        %743 = vmatprep.subr.mxu0 0.0
        %744 = vmatpush1.msra.mxu0 0.0
        %745 = vmatprep.subr.mxu0 0.0
        %746 = vmatpush1.msra.mxu0 0.0
        %747 = vmatprep.subr.mxu0 0.0
        %748 = vmatpush1.msra.mxu0 0.0
        %749 = vmatprep.subr.mxu0 0.0
        %750 = vmatpush1.msra.mxu0 0.0
        %751 = vmatprep.subr.mxu0 0.0
        %752 = vmatpush1.msra.mxu0 0.0
        %753 = vmatprep.subr.mxu0 0.0
        %754 = vmatpush1.msra.mxu0 0.0
        %755 = vmatprep.subr.mxu0 0.0
        %756 = vmatpush1.msra.mxu0 0.0
        %757 = vmatprep.subr.mxu0 0.0
        %758 = vmatpush1.msra.mxu0 0.0
        %759 = vmatprep.subr.mxu0 0.0
        %760 = vmatpush1.msra.mxu0 0.0
        %761 = vmatprep.subr.mxu0 0.0
        %762 = vmatpush1.msra.mxu0 0.0
        %763 = vmatprep.subr.mxu0 0.0
        %764 = vmatpush1.msra.mxu0 0.0
        %765 = vmatprep.subr.mxu0 0.0
        %766 = vmatpush1.msra.mxu0 0.0
        %767 = vmatprep.subr.mxu0 0.0
        %768 = vmatpush1.msra.mxu0 0.0
        %769 = vmatprep.subr.mxu0 0.0
        %770 = vmatpush1.msra.mxu0 0.0
        %771 = vmatprep.subr.mxu0 0.0
        %772 = vmatpush1.msra.mxu0 0.0
        %773 = vmatprep.subr.mxu0 0.0
        %774 = vmatpush1.msra.mxu0 0.0
        %775 = vmatprep.subr.mxu0 0.0
        %776 = vmatpush1.msra.mxu0 0.0
        %777 = vmatprep.subr.mxu0 0.0
        %778 = vmatpush1.msra.mxu0 0.0
        %779 = vmatprep.mubr.f32.mxu0 0.0
        %780 = vmatmul.mubr.f32.gmra.mrb[0].mxu0 %v713
        %v781 = vpop.f32.mrb[0].mxu0
        %v782 = vadd.f32 0.0, %v781
        %v783 = vpop.f32.mrb[0].mxu0
        %784 = vdwg.mxu0
        %785 = vrot.lane.b32.xlu0 %v684, 126
        %v786 = vpop.permute.xlu0 %785
        %787 = vrot.lane.b32.xlu0 %v685, 126
        %v788 = vpop.permute.xlu0 %787
        %791 = vmatprep.subr.mxu0 0.0
        %792 = vmatpush1.msra.mxu0 %v786
        %793 = vmatprep.subr.mxu0 0.0
        %794 = vmatpush1.msra.mxu0 %v788
        %795 = vmatprep.subr.mxu0 0.0
        %796 = vmatpush1.msra.mxu0 0.0
        %797 = vmatprep.subr.mxu0 0.0
        %798 = vmatpush1.msra.mxu0 0.0
        %799 = vmatprep.subr.mxu0 0.0
        %800 = vmatpush1.msra.mxu0 0.0
        %801 = vmatprep.subr.mxu0 0.0
        %802 = vmatpush1.msra.mxu0 0.0
        %803 = vmatprep.subr.mxu0 0.0
        %804 = vmatpush1.msra.mxu0 0.0
        %805 = vmatprep.subr.mxu0 0.0
        %806 = vmatpush1.msra.mxu0 0.0
        %807 = vmatprep.subr.mxu0 0.0
        %808 = vmatpush1.msra.mxu0 0.0
        %809 = vmatprep.subr.mxu0 0.0
        %810 = vmatpush1.msra.mxu0 0.0
        %811 = vmatprep.subr.mxu0 0.0
        %812 = vmatpush1.msra.mxu0 0.0
        %813 = vmatprep.subr.mxu0 0.0
        %814 = vmatpush1.msra.mxu0 0.0
        %815 = vmatprep.subr.mxu0 0.0
        %816 = vmatpush1.msra.mxu0 0.0
        %817 = vmatprep.subr.mxu0 0.0
        %818 = vmatpush1.msra.mxu0 0.0
        %819 = vmatprep.subr.mxu0 0.0
        %820 = vmatpush1.msra.mxu0 0.0
        %821 = vmatprep.subr.mxu0 0.0
        %822 = vmatpush1.msra.mxu0 0.0
        %823 = vmatprep.subr.mxu0 0.0
        %824 = vmatpush1.msra.mxu0 0.0
        %825 = vmatprep.subr.mxu0 0.0
        %826 = vmatpush1.msra.mxu0 0.0
        %827 = vmatprep.subr.mxu0 0.0
        %828 = vmatpush1.msra.mxu0 0.0
        %829 = vmatprep.subr.mxu0 0.0
        %830 = vmatpush1.msra.mxu0 0.0
        %831 = vmatprep.subr.mxu0 0.0
        %832 = vmatpush1.msra.mxu0 0.0
        %833 = vmatprep.subr.mxu0 0.0
        %834 = vmatpush1.msra.mxu0 0.0
        %835 = vmatprep.subr.mxu0 0.0
        %836 = vmatpush1.msra.mxu0 0.0
        %837 = vmatprep.subr.mxu0 0.0
        %838 = vmatpush1.msra.mxu0 0.0
        %839 = vmatprep.subr.mxu0 0.0
        %840 = vmatpush1.msra.mxu0 0.0
        %841 = vmatprep.subr.mxu0 0.0
        %842 = vmatpush1.msra.mxu0 0.0
        %843 = vmatprep.subr.mxu0 0.0
        %844 = vmatpush1.msra.mxu0 0.0
        %845 = vmatprep.subr.mxu0 0.0
        %846 = vmatpush1.msra.mxu0 0.0
        %847 = vmatprep.subr.mxu0 0.0
        %848 = vmatpush1.msra.mxu0 0.0
        %849 = vmatprep.subr.mxu0 0.0
        %850 = vmatpush1.msra.mxu0 0.0
        %851 = vmatprep.subr.mxu0 0.0
        %852 = vmatpush1.msra.mxu0 0.0
        %853 = vmatprep.subr.mxu0 0.0
        %854 = vmatpush1.msra.mxu0 0.0
        %855 = vmatprep.mubr.f32.mxu0 0.0
        %856 = vmatmul.mubr.f32.gmra.mrb[0].mxu0 %v713
        %v857 = vpop.f32.mrb[0].mxu0
        %v858 = vadd.f32 0.0, %v857
        %v859 = vpop.f32.mrb[0].mxu0
        %860 = vdwg.mxu0
        %v861 = vmax.f32 %v858, 1.0
        %863 = vset.pattern.permute.xlu0 0
        %864 = vperm.xlu0 %863, %v861
        %v865 = vpop.permute.xlu0 %864
        %v867 = vrcp.pop %v865
        %v868 = vmul.f32 %v782, %v867
        %v869 = vmul.f32 %v261, %v703
        %v870 = vmul.f32 %v262, %v708
        %v871 = vlaneseq
        %v872 = vshrl.u32 %v871, 7
        %vm873 = vcmp.gt.f32.partialorder %v869, 0.5
        %vm874 = vcmp.gt.f32.partialorder %v870, 0.5
        %v875 = vsel %vm873, 1, 0
        %v876 = vsel %vm874, 1, 0
        %877 = vset.pattern.permute.xlu0 0
        %878 = vperm.xlu0 %877, %v875
        %v879 = vpop.permute.xlu0 %878
        %880 = vset.pattern.permute.xlu0 0
        %881 = vperm.xlu0 %880, %v876
        %v882 = vpop.permute.xlu0 %881
        %vm883 = vcmp.eq.s32.totalorder %v879, 1
        %vm884 = vcmp.eq.s32.totalorder %v882, 1
        %v885 = vsel %vm883, %v698, -1e+30
        %v886 = vsel %vm884, %v699, -1e+30
        %v887 = vsel %vm480, %v885, -inf
        %v888 = vsel %vm480, %v886, -inf
        %v889 = vmax.f32 %v887, %v888
        %v890 = vrot.slane %v889, 4
        %v891 = vmax.f32 %v889, %v890
        %v892 = vrot.slane %v891, 2
        %v893 = vmax.f32 %v891, %v892
        %v894 = vrot.slane %v893, 1
        %v895 = vmax.f32 %v893, %v894
        %vm896 = vcmp.eq.s32.totalorder %v872, 0
        %v897 = vsel %vm896, 1.0, 0.0
        %v898 = vmul.f32 %v897, %v895
        %v899 = vadd.f32 %v898, 0.0
        %900 = vset.pattern.permute.xlu0 1
        %901 = vperm.xlu0 %900, %v875
        %v902 = vpop.permute.xlu0 %901
        %903 = vset.pattern.permute.xlu0 1
        %904 = vperm.xlu0 %903, %v876
        %v905 = vpop.permute.xlu0 %904
        %vm906 = vcmp.eq.s32.totalorder %v902, 1
        %vm907 = vcmp.eq.s32.totalorder %v905, 1
        %v908 = vsel %vm906, %v698, -1e+30
        %v909 = vsel %vm907, %v699, -1e+30
        %v910 = vsel %vm480, %v908, -inf
        %v911 = vsel %vm480, %v909, -inf
        %v912 = vmax.f32 %v910, %v911
        %v913 = vrot.slane %v912, 4
        %v914 = vmax.f32 %v912, %v913
        %v915 = vrot.slane %v914, 2
        %v916 = vmax.f32 %v914, %v915
        %v917 = vrot.slane %v916, 1
        %v918 = vmax.f32 %v916, %v917
        %vm919 = vcmp.eq.s32.totalorder %v872, 1
        %v920 = vsel %vm919, 1.0, 0.0
        %v921 = vmul.f32 %v920, %v918
        %v922 = vadd.f32 %v899, %v921
        %v924 = vsel %vm396, %v304, 0
        %v927 = vsel %vm396, %v305, 0
        %929 = vmatprep.subr.mxu0 0.0
        %930 = vmatpush1.msra.mxu0 %v272
        %931 = vmatprep.subr.mxu0 0.0
        %932 = vmatpush1.msra.mxu0 %v273
        %933 = vmatprep.subr.mxu0 0.0
        %934 = vmatpush1.msra.mxu0 0.0
        %935 = vmatprep.subr.mxu0 0.0
        %936 = vmatpush1.msra.mxu0 0.0
        %937 = vmatprep.subr.mxu0 0.0
        %938 = vmatpush1.msra.mxu0 0.0
        %939 = vmatprep.subr.mxu0 0.0
        %940 = vmatpush1.msra.mxu0 0.0
        %941 = vmatprep.subr.mxu0 0.0
        %942 = vmatpush1.msra.mxu0 0.0
        %943 = vmatprep.subr.mxu0 0.0
        %944 = vmatpush1.msra.mxu0 0.0
        %945 = vmatprep.subr.mxu0 0.0
        %946 = vmatpush1.msra.mxu0 0.0
        %947 = vmatprep.subr.mxu0 0.0
        %948 = vmatpush1.msra.mxu0 0.0
        %949 = vmatprep.subr.mxu0 0.0
        %950 = vmatpush1.msra.mxu0 0.0
        %951 = vmatprep.subr.mxu0 0.0
        %952 = vmatpush1.msra.mxu0 0.0
        %953 = vmatprep.subr.mxu0 0.0
        %954 = vmatpush1.msra.mxu0 0.0
        %955 = vmatprep.subr.mxu0 0.0
        %956 = vmatpush1.msra.mxu0 0.0
        %957 = vmatprep.subr.mxu0 0.0
        %958 = vmatpush1.msra.mxu0 0.0
        %959 = vmatprep.subr.mxu0 0.0
        %960 = vmatpush1.msra.mxu0 0.0
        %961 = vmatprep.subr.mxu0 0.0
        %962 = vmatpush1.msra.mxu0 0.0
        %963 = vmatprep.subr.mxu0 0.0
        %964 = vmatpush1.msra.mxu0 0.0
        %965 = vmatprep.subr.mxu0 0.0
        %966 = vmatpush1.msra.mxu0 0.0
        %967 = vmatprep.subr.mxu0 0.0
        %968 = vmatpush1.msra.mxu0 0.0
        %969 = vmatprep.subr.mxu0 0.0
        %970 = vmatpush1.msra.mxu0 0.0
        %971 = vmatprep.subr.mxu0 0.0
        %972 = vmatpush1.msra.mxu0 0.0
        %973 = vmatprep.subr.mxu0 0.0
        %974 = vmatpush1.msra.mxu0 0.0
        %975 = vmatprep.subr.mxu0 0.0
        %976 = vmatpush1.msra.mxu0 0.0
        %977 = vmatprep.subr.mxu0 0.0
        %978 = vmatpush1.msra.mxu0 0.0
        %979 = vmatprep.subr.mxu0 0.0
        %980 = vmatpush1.msra.mxu0 0.0
        %981 = vmatprep.subr.mxu0 0.0
        %982 = vmatpush1.msra.mxu0 0.0
        %983 = vmatprep.subr.mxu0 0.0
        %984 = vmatpush1.msra.mxu0 0.0
        %985 = vmatprep.subr.mxu0 0.0
        %986 = vmatpush1.msra.mxu0 0.0
        %987 = vmatprep.subr.mxu0 0.0
        %988 = vmatpush1.msra.mxu0 0.0
        %989 = vmatprep.subr.mxu0 0.0
        %990 = vmatpush1.msra.mxu0 0.0
        %991 = vmatprep.subr.mxu0 0.0
        %992 = vmatpush1.msra.mxu0 0.0
        %993 = vmatprep.mubr.f32.mxu0 0.0
        %994 = vmatmul.mubr.f32.gmra.mrb[0].mxu0 %v924
        %v995 = vpop.f32.mrb[0].mxu0
        %v996 = vadd.f32 0.0, %v995
        %v997 = vpop.f32.mrb[0].mxu0
        %998 = vmatprep.mubr.f32.mxu0 0.0
        %999 = vmatmul.mubr.f32.gmra.mrb[0].mxu0 %v927
        %v1000 = vpop.f32.mrb[0].mxu0
        %v1001 = vadd.f32 0.0, %v1000
        %v1002 = vpop.f32.mrb[0].mxu0
        %1003 = vdwg.mxu0
        %v1004 = vlaneseq
        %v1005 = vshrl.u32 %v1004, 7
        %v1006 = vsub.s32 0, %v1005
        %v1007 = vrot.slane %v274, %v1006
        %v1009 = vsel %vm396, %v249, 0
        %v1012 = vsel %vm396, %v250, 0
        %1014 = vmatprep.subr.mxu0 0.0
        %1015 = vmatpush1.msra.mxu0 %v996
        %1016 = vmatprep.subr.mxu0 0.0
        %1017 = vmatpush1.msra.mxu0 %v1001
        %1018 = vmatprep.subr.mxu0 0.0
        %1019 = vmatpush1.msra.mxu0 0.0
        %1020 = vmatprep.subr.mxu0 0.0
        %1021 = vmatpush1.msra.mxu0 0.0
        %1022 = vmatprep.subr.mxu0 0.0
        %1023 = vmatpush1.msra.mxu0 0.0
        %1024 = vmatprep.subr.mxu0 0.0
        %1025 = vmatpush1.msra.mxu0 0.0
        %1026 = vmatprep.subr.mxu0 0.0
        %1027 = vmatpush1.msra.mxu0 0.0
        %1028 = vmatprep.subr.mxu0 0.0
        %1029 = vmatpush1.msra.mxu0 0.0
        %1030 = vmatprep.subr.mxu0 0.0
        %1031 = vmatpush1.msra.mxu0 0.0
        %1032 = vmatprep.subr.mxu0 0.0
        %1033 = vmatpush1.msra.mxu0 0.0
        %1034 = vmatprep.subr.mxu0 0.0
        %1035 = vmatpush1.msra.mxu0 0.0
        %1036 = vmatprep.subr.mxu0 0.0
        %1037 = vmatpush1.msra.mxu0 0.0
        %1038 = vmatprep.subr.mxu0 0.0
        %1039 = vmatpush1.msra.mxu0 0.0
        %1040 = vmatprep.subr.mxu0 0.0
        %1041 = vmatpush1.msra.mxu0 0.0
        %1042 = vmatprep.subr.mxu0 0.0
        %1043 = vmatpush1.msra.mxu0 0.0
        %1044 = vmatprep.subr.mxu0 0.0
        %1045 = vmatpush1.msra.mxu0 0.0
        %1046 = vmatprep.subr.mxu0 0.0
        %1047 = vmatpush1.msra.mxu0 0.0
        %1048 = vmatprep.subr.mxu0 0.0
        %1049 = vmatpush1.msra.mxu0 0.0
        %1050 = vmatprep.subr.mxu0 0.0
        %1051 = vmatpush1.msra.mxu0 0.0
        %1052 = vmatprep.subr.mxu0 0.0
        %1053 = vmatpush1.msra.mxu0 0.0
        %1054 = vmatprep.subr.mxu0 0.0
        %1055 = vmatpush1.msra.mxu0 0.0
        %1056 = vmatprep.subr.mxu0 0.0
        %1057 = vmatpush1.msra.mxu0 0.0
        %1058 = vmatprep.subr.mxu0 0.0
        %1059 = vmatpush1.msra.mxu0 0.0
        %1060 = vmatprep.subr.mxu0 0.0
        %1061 = vmatpush1.msra.mxu0 0.0
        %1062 = vmatprep.subr.mxu0 0.0
        %1063 = vmatpush1.msra.mxu0 0.0
        %1064 = vmatprep.subr.mxu0 0.0
        %1065 = vmatpush1.msra.mxu0 0.0
        %1066 = vmatprep.subr.mxu0 0.0
        %1067 = vmatpush1.msra.mxu0 0.0
        %1068 = vmatprep.subr.mxu0 0.0
        %1069 = vmatpush1.msra.mxu0 0.0
        %1070 = vmatprep.subr.mxu0 0.0
        %1071 = vmatpush1.msra.mxu0 0.0
        %1072 = vmatprep.subr.mxu0 0.0
        %1073 = vmatpush1.msra.mxu0 0.0
        %1074 = vmatprep.subr.mxu0 0.0
        %1075 = vmatpush1.msra.mxu0 0.0
        %1076 = vmatprep.subr.mxu0 0.0
        %1077 = vmatpush1.msra.mxu0 0.0
        %1078 = vmatprep.mubr.f32.mxu0 0.0
        %1079 = vmatmul.mubr.f32.gmra.mrb[0].mxu0 %v1009
        %v1080 = vpop.f32.mrb[0].mxu0
        %v1081 = vadd.f32 %v1007, %v1080
        %v1082 = vpop.f32.mrb[0].mxu0
        %1083 = vmatprep.mubr.f32.mxu0 0.0
        %1084 = vmatmul.mubr.f32.gmra.mrb[0].mxu0 %v1012
        %v1085 = vpop.f32.mrb[0].mxu0
        %v1086 = vadd.f32 %v1007, %v1085
        %v1087 = vpop.f32.mrb[0].mxu0
        %1088 = vdwg.mxu0
        %v1089 = vmax.f32 %v1081, 0.0
        %v1090 = vmax.f32 %v1086, 0.0
        %v1092 = vsel %vm480, %v1089, 0
        %v1095 = vsel %vm480, %v1090, 0
        %1097 = vmatprep.subr.mxu0 0.0
        %1098 = vmatpush1.msra.mxu0 %v275
        %1099 = vmatprep.subr.mxu0 0.0
        %1100 = vmatpush1.msra.mxu0 %v276
        %1101 = vmatprep.subr.mxu0 0.0
        %1102 = vmatpush1.msra.mxu0 %v277
        %1103 = vmatprep.subr.mxu0 0.0
        %1104 = vmatpush1.msra.mxu0 %v278
        %1105 = vmatprep.subr.mxu0 0.0
        %1106 = vmatpush1.msra.mxu0 0.0
        %1107 = vmatprep.subr.mxu0 0.0
        %1108 = vmatpush1.msra.mxu0 0.0
        %1109 = vmatprep.subr.mxu0 0.0
        %1110 = vmatpush1.msra.mxu0 0.0
        %1111 = vmatprep.subr.mxu0 0.0
        %1112 = vmatpush1.msra.mxu0 0.0
        %1113 = vmatprep.subr.mxu0 0.0
        %1114 = vmatpush1.msra.mxu0 0.0
        %1115 = vmatprep.subr.mxu0 0.0
        %1116 = vmatpush1.msra.mxu0 0.0
        %1117 = vmatprep.subr.mxu0 0.0
        %1118 = vmatpush1.msra.mxu0 0.0
        %1119 = vmatprep.subr.mxu0 0.0
        %1120 = vmatpush1.msra.mxu0 0.0
        %1121 = vmatprep.subr.mxu0 0.0
        %1122 = vmatpush1.msra.mxu0 0.0
        %1123 = vmatprep.subr.mxu0 0.0
        %1124 = vmatpush1.msra.mxu0 0.0
        %1125 = vmatprep.subr.mxu0 0.0
        %1126 = vmatpush1.msra.mxu0 0.0
        %1127 = vmatprep.subr.mxu0 0.0
        %1128 = vmatpush1.msra.mxu0 0.0
        %1129 = vmatprep.subr.mxu0 0.0
        %1130 = vmatpush1.msra.mxu0 0.0
        %1131 = vmatprep.subr.mxu0 0.0
        %1132 = vmatpush1.msra.mxu0 0.0
        %1133 = vmatprep.subr.mxu0 0.0
        %1134 = vmatpush1.msra.mxu0 0.0
        %1135 = vmatprep.subr.mxu0 0.0
        %1136 = vmatpush1.msra.mxu0 0.0
        %1137 = vmatprep.subr.mxu0 0.0
        %1138 = vmatpush1.msra.mxu0 0.0
        %1139 = vmatprep.subr.mxu0 0.0
        %1140 = vmatpush1.msra.mxu0 0.0
        %1141 = vmatprep.subr.mxu0 0.0
        %1142 = vmatpush1.msra.mxu0 0.0
        %1143 = vmatprep.subr.mxu0 0.0
        %1144 = vmatpush1.msra.mxu0 0.0
        %1145 = vmatprep.subr.mxu0 0.0
        %1146 = vmatpush1.msra.mxu0 0.0
        %1147 = vmatprep.subr.mxu0 0.0
        %1148 = vmatpush1.msra.mxu0 0.0
        %1149 = vmatprep.subr.mxu0 0.0
        %1150 = vmatpush1.msra.mxu0 0.0
        %1151 = vmatprep.subr.mxu0 0.0
        %1152 = vmatpush1.msra.mxu0 0.0
        %1153 = vmatprep.subr.mxu0 0.0
        %1154 = vmatpush1.msra.mxu0 0.0
        %1155 = vmatprep.subr.mxu0 0.0
        %1156 = vmatpush1.msra.mxu0 0.0
        %1157 = vmatprep.subr.mxu0 0.0
        %1158 = vmatpush1.msra.mxu0 0.0
        %1159 = vmatprep.subr.mxu0 0.0
        %1160 = vmatpush1.msra.mxu0 0.0
        %1161 = vmatprep.mubr.f32.mxu0 0.0
        %1162 = vmatmul.mubr.f32.gmra.mrb[0].mxu0 %v1092
        %v1163 = vpop.f32.mrb[0].mxu0
        %v1164 = vadd.f32 0.0, %v1163
        %v1165 = vpop.f32.mrb[0].mxu0
        %1166 = vmatprep.mubr.f32.mxu0 0.0
        %1167 = vmatmul.mubr.f32.gmra.mrb[0].mxu0 %v1095
        %v1168 = vpop.f32.mrb[0].mxu0
        %v1169 = vadd.f32 0.0, %v1168
        %v1170 = vpop.f32.mrb[0].mxu0
        %1171 = vdwg.mxu0
        %v1172 = vlaneseq
        %v1173 = vshrl.u32 %v1172, 7
        %v1174 = vsub.s32 0, %v1173
        %v1175 = vrot.slane %v279, %v1174
        %1176 = vmatprep.subr.mxu0 0.0
        %1177 = vmatpush1.msra.mxu0 %v1164
        %1178 = vmatprep.subr.mxu0 0.0
        %1179 = vmatpush1.msra.mxu0 %v1169
        %1180 = vmatprep.subr.mxu0 0.0
        %1181 = vmatpush1.msra.mxu0 0.0
        %1182 = vmatprep.subr.mxu0 0.0
        %1183 = vmatpush1.msra.mxu0 0.0
        %1184 = vmatprep.subr.mxu0 0.0
        %1185 = vmatpush1.msra.mxu0 0.0
        %1186 = vmatprep.subr.mxu0 0.0
        %1187 = vmatpush1.msra.mxu0 0.0
        %1188 = vmatprep.subr.mxu0 0.0
        %1189 = vmatpush1.msra.mxu0 0.0
        %1190 = vmatprep.subr.mxu0 0.0
        %1191 = vmatpush1.msra.mxu0 0.0
        %1192 = vmatprep.subr.mxu0 0.0
        %1193 = vmatpush1.msra.mxu0 0.0
        %1194 = vmatprep.subr.mxu0 0.0
        %1195 = vmatpush1.msra.mxu0 0.0
        %1196 = vmatprep.subr.mxu0 0.0
        %1197 = vmatpush1.msra.mxu0 0.0
        %1198 = vmatprep.subr.mxu0 0.0
        %1199 = vmatpush1.msra.mxu0 0.0
        %1200 = vmatprep.subr.mxu0 0.0
        %1201 = vmatpush1.msra.mxu0 0.0
        %1202 = vmatprep.subr.mxu0 0.0
        %1203 = vmatpush1.msra.mxu0 0.0
        %1204 = vmatprep.subr.mxu0 0.0
        %1205 = vmatpush1.msra.mxu0 0.0
        %1206 = vmatprep.subr.mxu0 0.0
        %1207 = vmatpush1.msra.mxu0 0.0
        %1208 = vmatprep.subr.mxu0 0.0
        %1209 = vmatpush1.msra.mxu0 0.0
        %1210 = vmatprep.subr.mxu0 0.0
        %1211 = vmatpush1.msra.mxu0 0.0
        %1212 = vmatprep.subr.mxu0 0.0
        %1213 = vmatpush1.msra.mxu0 0.0
        %1214 = vmatprep.subr.mxu0 0.0
        %1215 = vmatpush1.msra.mxu0 0.0
        %1216 = vmatprep.subr.mxu0 0.0
        %1217 = vmatpush1.msra.mxu0 0.0
        %1218 = vmatprep.subr.mxu0 0.0
        %1219 = vmatpush1.msra.mxu0 0.0
        %1220 = vmatprep.subr.mxu0 0.0
        %1221 = vmatpush1.msra.mxu0 0.0
        %1222 = vmatprep.subr.mxu0 0.0
        %1223 = vmatpush1.msra.mxu0 0.0
        %1224 = vmatprep.subr.mxu0 0.0
        %1225 = vmatpush1.msra.mxu0 0.0
        %1226 = vmatprep.subr.mxu0 0.0
        %1227 = vmatpush1.msra.mxu0 0.0
        %1228 = vmatprep.subr.mxu0 0.0
        %1229 = vmatpush1.msra.mxu0 0.0
        %1230 = vmatprep.subr.mxu0 0.0
        %1231 = vmatpush1.msra.mxu0 0.0
        %1232 = vmatprep.subr.mxu0 0.0
        %1233 = vmatpush1.msra.mxu0 0.0
        %1234 = vmatprep.subr.mxu0 0.0
        %1235 = vmatpush1.msra.mxu0 0.0
        %1236 = vmatprep.subr.mxu0 0.0
        %1237 = vmatpush1.msra.mxu0 0.0
        %1238 = vmatprep.subr.mxu0 0.0
        %1239 = vmatpush1.msra.mxu0 0.0
        %1240 = vmatprep.mubr.f32.mxu0 0.0
        %1241 = vmatmul.mubr.f32.gmra.mrb[0].mxu0 %v1009
        %v1242 = vpop.f32.mrb[0].mxu0
        %v1243 = vadd.f32 %v1175, %v1242
        %v1244 = vpop.f32.mrb[0].mxu0
        %1245 = vmatprep.mubr.f32.mxu0 0.0
        %1246 = vmatmul.mubr.f32.gmra.mrb[0].mxu0 %v1012
        %v1247 = vpop.f32.mrb[0].mxu0
        %v1248 = vadd.f32 %v1175, %v1247
        %v1249 = vpop.f32.mrb[0].mxu0
        %1250 = vdwg.mxu0
        %1252 = vset.pattern.permute.xlu0 0
        %1253 = vperm.xlu0 %1252, %v1243
        %v1254 = vpop.permute.xlu0 %1253
        %1257 = vset.pattern.permute.xlu0 0
        %1258 = vperm.xlu0 %1257, %v1248
        %v1259 = vpop.permute.xlu0 %1258
        %v1261 = vmul.f32 %v1254, %v255
        %v1262 = vmul.f32 %v1259, %v256
        %v1263 = vsel %vm396, %v1261, 0.0
        %v1264 = vsel %vm396, %v1262, 0.0
        %v1265 = vadd.f32 %v1263, %v1264
        %v1266 = vrot.slane %v1265, 4
        %v1267 = vadd.f32 %v1265, %v1266
        %v1268 = vrot.slane %v1267, 2
        %v1269 = vadd.f32 %v1267, %v1268
        %v1270 = vrot.slane %v1269, 1
        %v1271 = vadd.f32 %v1269, %v1270
        %vm1272 = vcmp.gt.f32.partialorder %v1271, %v1254
        %vm1273 = vcmp.gt.f32.partialorder %v1271, %v1259
        %vm1274 = vcmp.eq.f32.partialorder %v1271, %v1254
        %vm1275 = vcmp.eq.f32.partialorder %v1271, %v1259
        %vm1276 = vmand %vm1274, %vm666
        %vm1277 = vmand %vm1275, %vm667
        %vm1278 = vmor %vm1272, %vm1276
        %vm1279 = vmor %vm1273, %vm1277
        %v1280 = vsel %vm1278, 1.0, 0.0
        %v1281 = vsel %vm1279, 1.0, 0.0
        %v1282 = vmul.f32 %v252, %v1280
        %v1283 = vmul.f32 %v253, %v1281
        %v1284 = vsel %vm396, %v1282, 0.0
        %1285 = vadd.xlane.f32.xlu0 %v1284
        %v1286 = vpop.xlane.xlu0 %1285
        %v1287 = vsel %vm396, %v1283, 0.0
        %1288 = vadd.xlane.f32.xlu0 %v1287
        %v1289 = vpop.xlane.xlu0 %1288
        %vm1290 = vcmp.lt.f32.partialorder %v1286, %v261
        %vm1291 = vcmp.lt.f32.partialorder %v1289, %v262
        %v1292 = vsel %vm1290, 1.0, 0.0
        %v1293 = vsel %vm1291, 1.0, 0.0
        %v1294 = vtanh.pop %v1243
        %v1295 = vtanh.pop %v1248
        %1297 = vset.pattern.permute.xlu0 0
        %1298 = vperm.xlu0 %1297, %v1294
        %v1299 = vpop.permute.xlu0 %1298
        %1302 = vset.pattern.permute.xlu0 0
        %1303 = vperm.xlu0 %1302, %v1295
        %v1304 = vpop.permute.xlu0 %1303
        %v1306 = vmul.f32 %v1089, %v1299
        %v1307 = vmul.f32 %v1090, %v1304
        %1309 = vset.pattern.permute.xlu0 2
        %1310 = vperm.xlu0 %1309, %v1292
        %v1311 = vpop.permute.xlu0 %1310
        %1314 = vset.pattern.permute.xlu0 2
        %1315 = vperm.xlu0 %1314, %v1293
        %v1316 = vpop.permute.xlu0 %1315
        %v1318 = vmul.f32 %v1311, %v1306
        %v1319 = vmul.f32 %v1316, %v1307
        %1320 = vmatprep.subr.mxu0 0.0
        %1321 = vmatpush1.msra.mxu0 %v1318
        %1322 = vmatprep.subr.mxu0 0.0
        %1323 = vmatpush1.msra.mxu0 %v1319
        %1324 = vmatprep.subr.mxu0 0.0
        %1325 = vmatpush1.msra.mxu0 0.0
        %1326 = vmatprep.subr.mxu0 0.0
        %1327 = vmatpush1.msra.mxu0 0.0
        %1328 = vmatprep.subr.mxu0 0.0
        %1329 = vmatpush1.msra.mxu0 0.0
        %1330 = vmatprep.subr.mxu0 0.0
        %1331 = vmatpush1.msra.mxu0 0.0
        %1332 = vmatprep.subr.mxu0 0.0
        %1333 = vmatpush1.msra.mxu0 0.0
        %1334 = vmatprep.subr.mxu0 0.0
        %1335 = vmatpush1.msra.mxu0 0.0
        %1336 = vmatprep.subr.mxu0 0.0
        %1337 = vmatpush1.msra.mxu0 0.0
        %1338 = vmatprep.subr.mxu0 0.0
        %1339 = vmatpush1.msra.mxu0 0.0
        %1340 = vmatprep.subr.mxu0 0.0
        %1341 = vmatpush1.msra.mxu0 0.0
        %1342 = vmatprep.subr.mxu0 0.0
        %1343 = vmatpush1.msra.mxu0 0.0
        %1344 = vmatprep.subr.mxu0 0.0
        %1345 = vmatpush1.msra.mxu0 0.0
        %1346 = vmatprep.subr.mxu0 0.0
        %1347 = vmatpush1.msra.mxu0 0.0
        %1348 = vmatprep.subr.mxu0 0.0
        %1349 = vmatpush1.msra.mxu0 0.0
        %1350 = vmatprep.subr.mxu0 0.0
        %1351 = vmatpush1.msra.mxu0 0.0
        %1352 = vmatprep.subr.mxu0 0.0
        %1353 = vmatpush1.msra.mxu0 0.0
        %1354 = vmatprep.subr.mxu0 0.0
        %1355 = vmatpush1.msra.mxu0 0.0
        %1356 = vmatprep.subr.mxu0 0.0
        %1357 = vmatpush1.msra.mxu0 0.0
        %1358 = vmatprep.subr.mxu0 0.0
        %1359 = vmatpush1.msra.mxu0 0.0
        %1360 = vmatprep.subr.mxu0 0.0
        %1361 = vmatpush1.msra.mxu0 0.0
        %1362 = vmatprep.subr.mxu0 0.0
        %1363 = vmatpush1.msra.mxu0 0.0
        %1364 = vmatprep.subr.mxu0 0.0
        %1365 = vmatpush1.msra.mxu0 0.0
        %1366 = vmatprep.subr.mxu0 0.0
        %1367 = vmatpush1.msra.mxu0 0.0
        %1368 = vmatprep.subr.mxu0 0.0
        %1369 = vmatpush1.msra.mxu0 0.0
        %1370 = vmatprep.subr.mxu0 0.0
        %1371 = vmatpush1.msra.mxu0 0.0
        %1372 = vmatprep.subr.mxu0 0.0
        %1373 = vmatpush1.msra.mxu0 0.0
        %1374 = vmatprep.subr.mxu0 0.0
        %1375 = vmatpush1.msra.mxu0 0.0
        %1376 = vmatprep.subr.mxu0 0.0
        %1377 = vmatpush1.msra.mxu0 0.0
        %1378 = vmatprep.subr.mxu0 0.0
        %1379 = vmatpush1.msra.mxu0 0.0
        %1380 = vmatprep.subr.mxu0 0.0
        %1381 = vmatpush1.msra.mxu0 0.0
        %1382 = vmatprep.subr.mxu0 0.0
        %1383 = vmatpush1.msra.mxu0 0.0
        %1384 = vmatprep.mubr.f32.mxu0 0.0
        %1385 = vmatmul.mubr.f32.gmra.mrb[0].mxu0 %v713
        %v1386 = vpop.f32.mrb[0].mxu0
        %v1387 = vadd.f32 0.0, %v1386
        %v1388 = vpop.f32.mrb[0].mxu0
        %1389 = vdwg.mxu0
        %1390 = vrot.lane.b32.xlu0 %v1292, 126
        %v1391 = vpop.permute.xlu0 %1390
        %1392 = vrot.lane.b32.xlu0 %v1293, 126
        %v1393 = vpop.permute.xlu0 %1392
        %1396 = vmatprep.subr.mxu0 0.0
        %1397 = vmatpush1.msra.mxu0 %v1391
        %1398 = vmatprep.subr.mxu0 0.0
        %1399 = vmatpush1.msra.mxu0 %v1393
        %1400 = vmatprep.subr.mxu0 0.0
        %1401 = vmatpush1.msra.mxu0 0.0
        %1402 = vmatprep.subr.mxu0 0.0
        %1403 = vmatpush1.msra.mxu0 0.0
        %1404 = vmatprep.subr.mxu0 0.0
        %1405 = vmatpush1.msra.mxu0 0.0
        %1406 = vmatprep.subr.mxu0 0.0
        %1407 = vmatpush1.msra.mxu0 0.0
        %1408 = vmatprep.subr.mxu0 0.0
        %1409 = vmatpush1.msra.mxu0 0.0
        %1410 = vmatprep.subr.mxu0 0.0
        %1411 = vmatpush1.msra.mxu0 0.0
        %1412 = vmatprep.subr.mxu0 0.0
        %1413 = vmatpush1.msra.mxu0 0.0
        %1414 = vmatprep.subr.mxu0 0.0
        %1415 = vmatpush1.msra.mxu0 0.0
        %1416 = vmatprep.subr.mxu0 0.0
        %1417 = vmatpush1.msra.mxu0 0.0
        %1418 = vmatprep.subr.mxu0 0.0
        %1419 = vmatpush1.msra.mxu0 0.0
        %1420 = vmatprep.subr.mxu0 0.0
        %1421 = vmatpush1.msra.mxu0 0.0
        %1422 = vmatprep.subr.mxu0 0.0
        %1423 = vmatpush1.msra.mxu0 0.0
        %1424 = vmatprep.subr.mxu0 0.0
        %1425 = vmatpush1.msra.mxu0 0.0
        %1426 = vmatprep.subr.mxu0 0.0
        %1427 = vmatpush1.msra.mxu0 0.0
        %1428 = vmatprep.subr.mxu0 0.0
        %1429 = vmatpush1.msra.mxu0 0.0
        %1430 = vmatprep.subr.mxu0 0.0
        %1431 = vmatpush1.msra.mxu0 0.0
        %1432 = vmatprep.subr.mxu0 0.0
        %1433 = vmatpush1.msra.mxu0 0.0
        %1434 = vmatprep.subr.mxu0 0.0
        %1435 = vmatpush1.msra.mxu0 0.0
        %1436 = vmatprep.subr.mxu0 0.0
        %1437 = vmatpush1.msra.mxu0 0.0
        %1438 = vmatprep.subr.mxu0 0.0
        %1439 = vmatpush1.msra.mxu0 0.0
        %1440 = vmatprep.subr.mxu0 0.0
        %1441 = vmatpush1.msra.mxu0 0.0
        %1442 = vmatprep.subr.mxu0 0.0
        %1443 = vmatpush1.msra.mxu0 0.0
        %1444 = vmatprep.subr.mxu0 0.0
        %1445 = vmatpush1.msra.mxu0 0.0
        %1446 = vmatprep.subr.mxu0 0.0
        %1447 = vmatpush1.msra.mxu0 0.0
        %1448 = vmatprep.subr.mxu0 0.0
        %1449 = vmatpush1.msra.mxu0 0.0
        %1450 = vmatprep.subr.mxu0 0.0
        %1451 = vmatpush1.msra.mxu0 0.0
        %1452 = vmatprep.subr.mxu0 0.0
        %1453 = vmatpush1.msra.mxu0 0.0
        %1454 = vmatprep.subr.mxu0 0.0
        %1455 = vmatpush1.msra.mxu0 0.0
        %1456 = vmatprep.subr.mxu0 0.0
        %1457 = vmatpush1.msra.mxu0 0.0
        %1458 = vmatprep.subr.mxu0 0.0
        %1459 = vmatpush1.msra.mxu0 0.0
        %1460 = vmatprep.mubr.f32.mxu0 0.0
        %1461 = vmatmul.mubr.f32.gmra.mrb[0].mxu0 %v713
        %v1462 = vpop.f32.mrb[0].mxu0
        %v1463 = vadd.f32 0.0, %v1462
        %v1464 = vpop.f32.mrb[0].mxu0
        %1465 = vdwg.mxu0
        %v1466 = vmax.f32 %v1463, 1.0
        %1468 = vset.pattern.permute.xlu0 0
        %1469 = vperm.xlu0 %1468, %v1466
        %v1470 = vpop.permute.xlu0 %1469
        %v1472 = vrcp.pop %v1470
        %v1473 = vmul.f32 %v1387, %v1472
        %v1474 = vmul.f32 %v261, %v1311
        %v1475 = vmul.f32 %v262, %v1316
        %vm1476 = vcmp.gt.f32.partialorder %v1474, 0.5
        %vm1477 = vcmp.gt.f32.partialorder %v1475, 0.5
        %v1478 = vsel %vm1476, 1, 0
        %v1479 = vsel %vm1477, 1, 0
        %1480 = vset.pattern.permute.xlu0 0
        %1481 = vperm.xlu0 %1480, %v1478
        %v1482 = vpop.permute.xlu0 %1481
        %1483 = vset.pattern.permute.xlu0 0
        %1484 = vperm.xlu0 %1483, %v1479
        %v1485 = vpop.permute.xlu0 %1484
        %vm1486 = vcmp.eq.s32.totalorder %v1482, 1
        %vm1487 = vcmp.eq.s32.totalorder %v1485, 1
        %v1488 = vsel %vm1486, %v1306, -1e+30
        %v1489 = vsel %vm1487, %v1307, -1e+30
        %v1490 = vsel %vm480, %v1488, -inf
        %v1491 = vsel %vm480, %v1489, -inf
        %v1492 = vmax.f32 %v1490, %v1491
        %v1493 = vrot.slane %v1492, 4
        %v1494 = vmax.f32 %v1492, %v1493
        %v1495 = vrot.slane %v1494, 2
        %v1496 = vmax.f32 %v1494, %v1495
        %v1497 = vrot.slane %v1496, 1
        %v1498 = vmax.f32 %v1496, %v1497
        %v1499 = vmul.f32 %v897, %v1498
        %v1500 = vadd.f32 %v1499, 0.0
        %1501 = vset.pattern.permute.xlu0 1
        %1502 = vperm.xlu0 %1501, %v1478
        %v1503 = vpop.permute.xlu0 %1502
        %1504 = vset.pattern.permute.xlu0 1
        %1505 = vperm.xlu0 %1504, %v1479
        %v1506 = vpop.permute.xlu0 %1505
        %vm1507 = vcmp.eq.s32.totalorder %v1503, 1
        %vm1508 = vcmp.eq.s32.totalorder %v1506, 1
        %v1509 = vsel %vm1507, %v1306, -1e+30
        %v1510 = vsel %vm1508, %v1307, -1e+30
        %v1511 = vsel %vm480, %v1509, -inf
        %v1512 = vsel %vm480, %v1510, -inf
        %v1513 = vmax.f32 %v1511, %v1512
        %v1514 = vrot.slane %v1513, 4
        %v1515 = vmax.f32 %v1513, %v1514
        %v1516 = vrot.slane %v1515, 2
        %v1517 = vmax.f32 %v1515, %v1516
        %v1518 = vrot.slane %v1517, 1
        %v1519 = vmax.f32 %v1517, %v1518
        %v1520 = vmul.f32 %v920, %v1519
        %v1521 = vadd.f32 %v1500, %v1520
        %vm1522 = vcmask 254976
        %1523 = vst.msk [vmem:[#allocation2] sm:$0x3] %vm1522, %v922
        %1525 = vrot.lane.b32.xlu0 %v868, 32
        %v1526 = vpop.permute.xlu0 %1525
        %vm1528 = vcmask 517376
        %1529 = vst.msk [vmem:[#allocation2] sm:$0x3] %vm1528, %v1526
        %1531 = vrot.lane.b32.xlu0 %v1521, 64
        %v1532 = vpop.permute.xlu0 %1531
        %vm1534 = vcmask 779776
        %1535 = vst.msk [vmem:[#allocation2] sm:$0x3] %vm1534, %v1532
        %1537 = vrot.lane.b32.xlu0 %v1473, 96
        %v1538 = vpop.permute.xlu0 %1537
        %vm1540 = vcmask 1042176
        %1541 = vst.msk [vmem:[#allocation2] sm:$0x3] %vm1540, %v1538
        %v1542 = vld [vmem:[#allocation2] sm:$0x3]
        %v1543 = vlaneseq
        %v1544 = vshrl.u32 %v1543, 7
        %v1545 = vsub.s32 0, %v1544
        %v1546 = vrot.slane %v296, %v1545
        %1547 = vmatprep.subr.mxu0 0.0
        %1548 = vmatpush1.msra.mxu0 %v280
        %1549 = vmatprep.subr.mxu0 0.0
        %1550 = vmatpush1.msra.mxu0 %v281
        %1551 = vmatprep.subr.mxu0 0.0
        %1552 = vmatpush1.msra.mxu0 %v282
        %1553 = vmatprep.subr.mxu0 0.0
        %1554 = vmatpush1.msra.mxu0 %v283
        %1555 = vmatprep.subr.mxu0 0.0
        %1556 = vmatpush1.msra.mxu0 %v284
        %1557 = vmatprep.subr.mxu0 0.0
        %1558 = vmatpush1.msra.mxu0 %v285
        %1559 = vmatprep.subr.mxu0 0.0
        %1560 = vmatpush1.msra.mxu0 %v286
        %1561 = vmatprep.subr.mxu0 0.0
        %1562 = vmatpush1.msra.mxu0 %v287
        %1563 = vmatprep.subr.mxu0 0.0
        %1564 = vmatpush1.msra.mxu0 %v288
        %1565 = vmatprep.subr.mxu0 0.0
        %1566 = vmatpush1.msra.mxu0 %v289
        %1567 = vmatprep.subr.mxu0 0.0
        %1568 = vmatpush1.msra.mxu0 %v290
        %1569 = vmatprep.subr.mxu0 0.0
        %1570 = vmatpush1.msra.mxu0 %v291
        %1571 = vmatprep.subr.mxu0 0.0
        %1572 = vmatpush1.msra.mxu0 %v292
        %1573 = vmatprep.subr.mxu0 0.0
        %1574 = vmatpush1.msra.mxu0 %v293
        %1575 = vmatprep.subr.mxu0 0.0
        %1576 = vmatpush1.msra.mxu0 %v294
        %1577 = vmatprep.subr.mxu0 0.0
        %1578 = vmatpush1.msra.mxu0 %v295
        %1579 = vmatprep.subr.mxu0 0.0
        %1580 = vmatpush1.msra.mxu0 0.0
        %1581 = vmatprep.subr.mxu0 0.0
        %1582 = vmatpush1.msra.mxu0 0.0
        %1583 = vmatprep.subr.mxu0 0.0
        %1584 = vmatpush1.msra.mxu0 0.0
        %1585 = vmatprep.subr.mxu0 0.0
        %1586 = vmatpush1.msra.mxu0 0.0
        %1587 = vmatprep.subr.mxu0 0.0
        %1588 = vmatpush1.msra.mxu0 0.0
        %1589 = vmatprep.subr.mxu0 0.0
        %1590 = vmatpush1.msra.mxu0 0.0
        %1591 = vmatprep.subr.mxu0 0.0
        %1592 = vmatpush1.msra.mxu0 0.0
        %1593 = vmatprep.subr.mxu0 0.0
        %1594 = vmatpush1.msra.mxu0 0.0
        %1595 = vmatprep.subr.mxu0 0.0
        %1596 = vmatpush1.msra.mxu0 0.0
        %1597 = vmatprep.subr.mxu0 0.0
        %1598 = vmatpush1.msra.mxu0 0.0
        %1599 = vmatprep.subr.mxu0 0.0
        %1600 = vmatpush1.msra.mxu0 0.0
        %1601 = vmatprep.subr.mxu0 0.0
        %1602 = vmatpush1.msra.mxu0 0.0
        %1603 = vmatprep.subr.mxu0 0.0
        %1604 = vmatpush1.msra.mxu0 0.0
        %1605 = vmatprep.subr.mxu0 0.0
        %1606 = vmatpush1.msra.mxu0 0.0
        %1607 = vmatprep.subr.mxu0 0.0
        %1608 = vmatpush1.msra.mxu0 0.0
        %1609 = vmatprep.subr.mxu0 0.0
        %1610 = vmatpush1.msra.mxu0 0.0
        %1611 = vmatprep.mubr.f32.mxu0 0.0
        %1612 = vmatmul.mubr.f32.gmra.mrb[0].mxu0 %v1542
        %v1613 = vpop.f32.mrb[0].mxu0
        %v1614 = vadd.f32 %v1546, %v1613
        %v1615 = vpop.f32.mrb[0].mxu0
        %1616 = vdwg.mxu0
        %v1617 = vmax.f32 %v1614, 0.0
        %v1618 = vlaneseq
        %v1619 = vshrl.u32 %v1618, 7
        %v1620 = vsub.s32 0, %v1619
        %v1621 = vrot.slane %v301, %v1620
        %v1623 = vsel %vm480, %v1617, 0
        %1625 = vmatprep.subr.mxu0 0.0
        %1626 = vmatpush1.msra.mxu0 %v297
        %1627 = vmatprep.subr.mxu0 0.0
        %1628 = vmatpush1.msra.mxu0 %v298
        %1629 = vmatprep.subr.mxu0 0.0
        %1630 = vmatpush1.msra.mxu0 %v299
        %1631 = vmatprep.subr.mxu0 0.0
        %1632 = vmatpush1.msra.mxu0 %v300
        %1633 = vmatprep.subr.mxu0 0.0
        %1634 = vmatpush1.msra.mxu0 0.0
        %1635 = vmatprep.subr.mxu0 0.0
        %1636 = vmatpush1.msra.mxu0 0.0
        %1637 = vmatprep.subr.mxu0 0.0
        %1638 = vmatpush1.msra.mxu0 0.0
        %1639 = vmatprep.subr.mxu0 0.0
        %1640 = vmatpush1.msra.mxu0 0.0
        %1641 = vmatprep.subr.mxu0 0.0
        %1642 = vmatpush1.msra.mxu0 0.0
        %1643 = vmatprep.subr.mxu0 0.0
        %1644 = vmatpush1.msra.mxu0 0.0
        %1645 = vmatprep.subr.mxu0 0.0
        %1646 = vmatpush1.msra.mxu0 0.0
        %1647 = vmatprep.subr.mxu0 0.0
        %1648 = vmatpush1.msra.mxu0 0.0
        %1649 = vmatprep.subr.mxu0 0.0
        %1650 = vmatpush1.msra.mxu0 0.0
        %1651 = vmatprep.subr.mxu0 0.0
        %1652 = vmatpush1.msra.mxu0 0.0
        %1653 = vmatprep.subr.mxu0 0.0
        %1654 = vmatpush1.msra.mxu0 0.0
        %1655 = vmatprep.subr.mxu0 0.0
        %1656 = vmatpush1.msra.mxu0 0.0
        %1657 = vmatprep.subr.mxu0 0.0
        %1658 = vmatpush1.msra.mxu0 0.0
        %1659 = vmatprep.subr.mxu0 0.0
        %1660 = vmatpush1.msra.mxu0 0.0
        %1661 = vmatprep.subr.mxu0 0.0
        %1662 = vmatpush1.msra.mxu0 0.0
        %1663 = vmatprep.subr.mxu0 0.0
        %1664 = vmatpush1.msra.mxu0 0.0
        %1665 = vmatprep.subr.mxu0 0.0
        %1666 = vmatpush1.msra.mxu0 0.0
        %1667 = vmatprep.subr.mxu0 0.0
        %1668 = vmatpush1.msra.mxu0 0.0
        %1669 = vmatprep.subr.mxu0 0.0
        %1670 = vmatpush1.msra.mxu0 0.0
        %1671 = vmatprep.subr.mxu0 0.0
        %1672 = vmatpush1.msra.mxu0 0.0
        %1673 = vmatprep.subr.mxu0 0.0
        %1674 = vmatpush1.msra.mxu0 0.0
        %1675 = vmatprep.subr.mxu0 0.0
        %1676 = vmatpush1.msra.mxu0 0.0
        %1677 = vmatprep.subr.mxu0 0.0
        %1678 = vmatpush1.msra.mxu0 0.0
        %1679 = vmatprep.subr.mxu0 0.0
        %1680 = vmatpush1.msra.mxu0 0.0
        %1681 = vmatprep.subr.mxu0 0.0
        %1682 = vmatpush1.msra.mxu0 0.0
        %1683 = vmatprep.subr.mxu0 0.0
        %1684 = vmatpush1.msra.mxu0 0.0
        %1685 = vmatprep.subr.mxu0 0.0
        %1686 = vmatpush1.msra.mxu0 0.0
        %1687 = vmatprep.subr.mxu0 0.0
        %1688 = vmatpush1.msra.mxu0 0.0
        %1689 = vmatprep.mubr.f32.mxu0 0.0
        %1690 = vmatmul.mubr.f32.gmra.mrb[0].mxu0 %v1623
        %v1691 = vpop.f32.mrb[0].mxu0
        %v1692 = vadd.f32 %v1621, %v1691
        %v1693 = vpop.f32.mrb[0].mxu0
        %1694 = vdwg.mxu0
        %v1695 = vlaneseq
        %v1696 = vand.u32 %v1695, 127
        %vm1697 = vcmp.lt.s32.totalorder %v1696, 3
        %v1698 = vsel %vm1697, %v1692, -1e+30
        %vm1699 = vcmask 1041408
        %v1700 = vsel %vm1699, %v1698, -inf
        %1701 = vmax.xlane.f32.xlu0 %v1700
        %v1702 = vpop.xlane.xlu0 %1701
        %v1703 = vsub.f32 %v1698, %v1702
        %v1704 = vmul.f32 %v1703, 1.442695
        %v1705 = vpow.pop %v1704
        %v1706 = vsel %vm1699, %v1705, 0.0
        %1707 = vadd.xlane.f32.xlu0 %v1706
        %v1708 = vpop.xlane.xlu0 %1707
        %v1709 = vlog2.pop %v1708
        %v1710 = vmul.f32 %v1709, 0.6931472
        %v1711 = vadd.f32 %v1702, %v1710
        %v1712 = vsub.f32 %v1698, %v1711
        %1713 = vst [vmem:[%s245] sm:$0x3] %v1712
        %p1714 = scmp.lt.s32.totalorder %s17, 7
        %s1715 = scalar_select %p1714, %s17, 7
        %s1716 = smul.addr %s1715, 2
        %s1717 = scalar_lea.vmem %s4, %s1716
        // Predicated region
        $region45: #{forward.1} parent=35 // pred_check
          %p1718 = pneg %p129
        $region46: #{forward.1} parent=35 // pred_check_branch
          %1720 = sbr.rel (%p1718) target = $region48
        $region47: #{forward.1} parent=35 // pred_region
          _
        $region48: #{forward.1} parent=35 // pred_fallthru
          _
      $region36: #{forward.1} parent=5 // pred_fallthru
        _
      %p1721 = scmp.le.s32.totalorder 2, %s12
      // Predicated region
      $region49: #{forward.1} parent=5 // pred_check
        %p1722 = pneg %p1721
      $region50: #{forward.1} parent=5 // pred_check_branch
        %1724 = sbr.rel (%p1722) target = $region52
      $region51: #{forward.1} parent=5 // pred_region
        %s1725 = ssub.s32 %s12, 2
        // Predicated region
        $region53: #{forward.1} parent=51 // pred_check
          %p1726 = pneg %p135
        $region54: #{forward.1} parent=51 // pred_check_branch
          %1728 = sbr.rel (%p1726) target = $region56
        $region55: #{forward.1} parent=51 // pred_region
          %p1729 = scmp.lt.s32.totalorder %s18, 7
          %s1730 = scalar_select %p1729, %s18, 7
          %s1731 = smul.addr %s1730, 2
          %s1732 = scalar_lea.vmem %s4, %s1731
        $region56: #{forward.1} parent=51 // pred_fallthru
          _
      $region52: #{forward.1} parent=5 // pred_fallthru
        _
    $region6: #{forward.1} parent=1 // loop_footer
      %s16 = sadd.s32 1, %s12
    $region7: #{forward.1} parent=1 // loop_footer_branch
      %11 = sbr.rel target = $region3
    $region8: #{forward.1} parent=1 // loop_exit
      _
    %1733 = vsyncpa [#allocation4], 1
    %s1734 = scalar_lea.sflag [#allocation4], 1
    %1735 = vsyncpa %s1734, 1
    %1736 = vsyncpa [#allocation6], 1

</llo_original>
